<compile_context>
chip_gen: v7x
topology: tpu7x:2x2x1
jax: 0.10.0
libtpu: 0.0.40
codegen_flags: <defaults>
</compile_context>

<pallas_src>
import functools

import numpy as np
import jax
import jax.numpy as jnp
from jax import lax
from jax.experimental import pallas as pl
from jax.experimental.pallas import tpu as pltpu


def _round_up(x, m):
    return (x + m - 1) // m * m


_VMEM_LIMIT = 48 * 1024 * 1024   # leaves headroom under v7x's 64 MiB physical VMEM


# ------------------------- shared in-kernel helper ------------------------- #

def _warp_accumulate(m_ref, dt_ref, coords_ref, vox_ref):
    """Accumulate per-channel IWE values for the current (candidate, tile).

    Returns (acc0, acc1, yy): [T, 1] f32 per-channel warped sums and the f32
    row coordinate of each flattened pixel (used for pad-pixel masking).
    """
    f32 = jnp.float32
    B, H, W2 = vox_ref.shape
    Wp = W2 // 2
    T = coords_ref.shape[0]

    c = pl.program_id(0)
    vx = m_ref[c, 0]
    vy = m_ref[c, 1]
    om = m_ref[c, 2]
    sc = m_ref[c, 3]
    dt = dt_ref[0] * (1.0 / 9.0)

    xx = coords_ref[:, 0:1]          # [T, 1]
    yy = coords_ref[:, 1:2]
    xr = coords_ref[:, 2:3]
    yr = coords_ref[:, 3:4]

    # Per-pixel flow direction; only the per-bin time scale varies below.
    ax = vx + sc * xr - om * yr      # [T, 1]
    ay = vy + sc * yr + om * xr

    # Hoisted iotas.  Must stay f32: the |lane - s| difference needs
    # sub-integer precision for coordinates up to W/H (bf16 would lose it).
    lane_h = lax.broadcasted_iota(jnp.int32, (T, H), 1).astype(f32)
    lane_w = lax.broadcasted_iota(jnp.int32, (T, Wp), 1).astype(f32)

    def bin_body(b, carry):
        acc0, acc1 = carry
        t = -dt * b.astype(f32)                         # 0, -dt, ..., -(B-1)*dt
        sx = xx + ax * t                                 # [T, 1]
        sy = yy + ay * t
        # Separable bilinear weights in "hat" form: max(0, 1 - |lane - s|).
        # Exactly reproduces zero-padded bilinear sampling (out-of-range
        # positions get weight 0 / hit zero-padded image columns).
        soft_row = jnp.maximum(1.0 - jnp.abs(lane_h - sy), 0.0).astype(jnp.bfloat16)
        soft_col = jnp.maximum(1.0 - jnp.abs(lane_w - sx), 0.0)          # [T, Wp] f32
        # One bf16 MXU gather serves BOTH channels; f32 accumulation.
        r = jnp.dot(soft_row, vox_ref[b], preferred_element_type=f32)    # [T, 2*Wp]
        acc0 = acc0 + jnp.sum(soft_col * r[:, :Wp], axis=1, keepdims=True)
        acc1 = acc1 + jnp.sum(soft_col * r[:, Wp:], axis=1, keepdims=True)
        return acc0, acc1

    acc0 = jnp.zeros((T, 1), f32)
    acc1 = jnp.zeros((T, 1), f32)
    # fori_loop (not a static Python loop) bounds per-bin live ranges to one bin.
    acc0, acc1 = lax.fori_loop(0, B, bin_body, (acc0, acc1))
    return acc0, acc1, yy


# ------------------------------ kernel bodies ------------------------------ #

def _iwe_kernel(m_ref, dt_ref, coords_ref, vox_ref, out_ref):
    """Full-IWE mode: write the per-channel warped image tile."""
    acc0, acc1, _ = _warp_accumulate(m_ref, dt_ref, coords_ref, vox_ref)
    out_ref[0, :, 0:1] = acc0
    out_ref[0, :, 1:2] = acc1


def _stats_kernel(m_ref, dt_ref, coords_ref, vox_ref, out_ref):
    """Reduced mode (for the FD optimizer loop): accumulate per-candidate
    per-channel (sum, sum_sq) across pixel tiles; the IWE never leaves VMEM."""
    H = vox_ref.shape[1]
    acc0, acc1, yy = _warp_accumulate(m_ref, dt_ref, coords_ref, vox_ref)

    @pl.when(pl.program_id(1) == 0)
    def _():
        out_ref[...] = jnp.zeros_like(out_ref)

    # Mask flattened pad pixels (yy == p // W >= H exactly on pad rows).
    valid = (yy < jnp.float32(H)).astype(jnp.float32)
    a0 = acc0 * valid
    a1 = acc1 * valid
    s0 = jnp.sum(a0)
    q0 = jnp.sum(a0 * a0)
    s1 = jnp.sum(a1)
    q1 = jnp.sum(a1 * a1)

    lane = lax.broadcasted_iota(jnp.int32, (1, 1, 128), 2)
    stats = (jnp.where(lane == 0, s0, 0.0) +
             jnp.where(lane == 1, q0, 0.0) +
             jnp.where(lane == 2, s1, 0.0) +
             jnp.where(lane == 3, q1, 0.0))
    out_ref[0:1, 0:1, :] = out_ref[0:1, 0:1, :] + stats


# ------------------------------ call builders ------------------------------ #

def _common_in_specs(B, H, Wp, T):
    return [
        pl.BlockSpec(memory_space=pltpu.MemorySpace.SMEM),        # m (n_cand, 4)
        pl.BlockSpec(memory_space=pltpu.MemorySpace.SMEM),        # dT (1,)
        pl.BlockSpec((T, 4), lambda c, t: (t, 0)),                # pixel coords
        pl.BlockSpec((B, H, 2 * Wp), lambda c, t: (0, 0, 0)),     # voxels (resident)
    ]


def _build_iwe_call(B, H, Wp, T, num_tiles, n_cand, hw_pad):
    return pl.pallas_call(
        _iwe_kernel,
        out_shape=jax.ShapeDtypeStruct((n_cand, hw_pad, 2), jnp.float32),
        grid=(n_cand, num_tiles),
        in_specs=_common_in_specs(B, H, Wp, T),
        out_specs=pl.BlockSpec((1, T, 2), lambda c, t: (c, t, 0)),
        compiler_params=pltpu.CompilerParams(
            dimension_semantics=("parallel", "parallel"),
            vmem_limit_bytes=_VMEM_LIMIT),
    )


def _build_stats_call(B, H, Wp, T, num_tiles, n_cand):
    return pl.pallas_call(
        _stats_kernel,
        out_shape=jax.ShapeDtypeStruct((n_cand, 8, 128), jnp.float32),
        grid=(n_cand, num_tiles),
        in_specs=_common_in_specs(B, H, Wp, T),
        # Stats block is revisited (accumulated) across the pixel-tile axis.
        out_specs=pl.BlockSpec((1, 8, 128), lambda c, t: (c, 0, 0)),
        compiler_params=pltpu.CompilerParams(
            dimension_semantics=("parallel", "arbitrary"),
            vmem_limit_bytes=_VMEM_LIMIT),
    )


# ------------------------------ host wrappers ------------------------------ #

def _tiling(HW, tile):
    if HW <= tile:
        T = max(8, _round_up(HW, 8))
        num_tiles = 1
    else:
        T = tile
        num_tiles = pl.cdiv(HW, T)
    return T, num_tiles, num_tiles * T


def _prep_inputs(input_n, tile):
    N, C, B, H, W = input_n.shape
    assert N == 1 and C == 2 and B == 9, "reference implies N=1, 2 polarities, 9 bins"
    HW = H * W
    Wp = _round_up(W, 128)
    T, num_tiles, hw_pad = _tiling(HW, tile)

    # Channel-concatenated, lane-padded bf16 voxel images: [B, H, 2*Wp].
    vox = jnp.zeros((B, H, 2 * Wp), jnp.bfloat16)
    vox = vox.at[:, :, :W].set(input_n[0, 0].astype(jnp.bfloat16))
    vox = vox.at[:, :, Wp:Wp + W].set(input_n[0, 1].astype(jnp.bfloat16))

    # Precomputed flattened pixel coordinates (no int div/mod in-kernel).
    p = jnp.arange(hw_pad, dtype=jnp.int32)
    yy = (p // W).astype(jnp.float32)     # >= H exactly on flattened pad pixels
    xx = (p % W).astype(jnp.float32)
    cx = (W - 1) / 2.0
    cy = (H - 1) / 2.0
    coords = jnp.stack([xx, yy, xx - cx, yy - cy], axis=1)        # (hw_pad, 4)
    return vox, coords, (B, H, W, Wp, T, num_tiles, hw_pad, HW)


@functools.partial(jax.jit, static_argnames=("tile",))
def _cost_stats_eval(input_n, dT, m_batch, tile=1024):
    """Contrast cost only (no IWE write-back) for a batch of motion candidates."""
    vox, coords, (B, H, W, Wp, T, num_tiles, hw_pad, HW) = _prep_inputs(input_n, tile)
    n_cand = m_batch.shape[0]
    m_batch = m_batch.astype(jnp.float32)
    dt_arr = jnp.reshape(jnp.asarray(dT, jnp.float32), (1,))

    stats = _build_stats_call(B, H, Wp, T, num_tiles, n_cand)(
        m_batch, dt_arr, coords, vox)                             # (n_cand, 8, 128)
    s0 = stats[:, 0, 0]
    q0 = stats[:, 0, 1]
    s1 = stats[:, 0, 2]
    q1 = stats[:, 0, 3]
    hw = jnp.float32(HW)
    var0 = (q0 - s0 * s0 / hw) / (hw - 1.0)                       # unbiased (torch.var)
    var1 = (q1 - s1 * s1 / hw) / (hw - 1.0)
    return -(var0 + var1)


@functools.partial(jax.jit, static_argnames=("tile",))
def _cost_iwe_eval(input_n, dT, m_batch, tile=1024):
    """Contrast cost AND per-channel IWE for a batch of motion candidates."""
    vox, coords, (B, H, W, Wp, T, num_tiles, hw_pad, HW) = _prep_inputs(input_n, tile)
    n_cand = m_batch.shape[0]
    m_batch = m_batch.astype(jnp.float32)
    dt_arr = jnp.reshape(jnp.asarray(dT, jnp.float32), (1,))

    out = _build_iwe_call(B, H, Wp, T, num_tiles, n_cand, hw_pad)(
        m_batch, dt_arr, coords, vox)                             # (n_cand, hw_pad, 2)
    iwe_ch = jnp.transpose(out[:, :HW, :], (0, 2, 1)).reshape(n_cand, 2, H, W)
    mean = jnp.mean(iwe_ch, axis=(2, 3), keepdims=True)
    d = iwe_ch - mean
    var = jnp.sum(d * d, axis=(2, 3)) / (HW - 1.0)                # unbiased (torch.var)
    cost = -(var[:, 0] + var[:, 1])
    return cost, iwe_ch


def cost_pallas(input_n, dT, m_model):
    """Pallas equivalent of Optimization.Cost -> (-(var0+var1), iwe[N,H,W])."""
    m_batch = jnp.reshape(jnp.asarray(m_model, jnp.float32), (1, 4))
    cost, iwe_ch = _cost_iwe_eval(jnp.asarray(input_n, jnp.float32),
                                  jnp.asarray(dT, jnp.float32), m_batch)
    return cost[0], iwe_ch[:, 0] + iwe_ch[:, 1]


# ----------------------- pure-JAX reference (check) ------------------------ #

def _pose2flow_ref(m, t, H, W):
    vx, vy, om, sc = m[0], m[1], m[2], m[3]
    ys, xs = jnp.meshgrid(jnp.arange(H, dtype=jnp.float32),
                          jnp.arange(W, dtype=jnp.float32), indexing="ij")
    cx = (W - 1) / 2.0
    cy = (H - 1) / 2.0
    xr = xs - cx
    yr = ys - cy
    fx = (vx + sc * xr - om * yr) * t
    fy = (vy + sc * yr + om * xr) * t
    return fx, fy


def _flow_warp_ref(img, fx, fy):
    H, W = img.shape
    ys, xs = jnp.meshgrid(jnp.arange(H, dtype=jnp.float32),
                          jnp.arange(W, dtype=jnp.float32), indexing="ij")
    sx = xs + fx
    sy = ys + fy
    x0 = jnp.floor(sx)
    y0 = jnp.floor(sy)
    wx1 = sx - x0
    wx0 = 1.0 - wx1
    wy1 = sy - y0
    wy0 = 1.0 - wy1

    def corner(yf, xf, w):
        valid = (yf >= 0) & (yf <= H - 1) & (xf >= 0) & (xf <= W - 1)
        yi = jnp.clip(yf, 0, H - 1).astype(jnp.int32)
        xi = jnp.clip(xf, 0, W - 1).astype(jnp.int32)
        return jnp.where(valid, img[yi, xi], 0.0) * w

    return (corner(y0, x0, wy0 * wx0) + corner(y0, x0 + 1, wy0 * wx1) +
            corner(y0 + 1, x0, wy1 * wx0) + corner(y0 + 1, x0 + 1, wy1 * wx1))


def cost_reference(input_n, dT, m):
    N, C, B, H, W = input_n.shape
    dt = dT / 9.0
    iwe_j = jnp.zeros((N, C, H, W), jnp.float32)
    for b in range(B):
        fx, fy = _pose2flow_ref(m, -b * dt, H, W)
        for n in range(N):
            for c in range(C):
                iwe_j = iwe_j.at[n, c].add(_flow_warp_ref(input_n[n, c, b], fx, fy))
    iwe = iwe_j[:, 0] + iwe_j[:, 1]
    var = (jnp.var(iwe_j[:, 0] - jnp.mean(iwe_j[:, 0]), ddof=1) +
           jnp.var(iwe_j[:, 1] - jnp.mean(iwe_j[:, 1]), ddof=1))
    return -var, iwe


# ----------------------- Optimization.forward driver ----------------------- #

def optimization_forward(input_n, dT, num_iters=10, lr=0.005, eps=1e-3):
    """Mirrors Optimization.forward: gradient descent on the contrast cost from
    m_model = ones(4); returns (m, cost, compensated image (H, W, 1))."""
    # TODO(synk): torch autograd .backward() has no Pallas equivalent; gradients
    # come from batched central finite differences (all 8 perturbed candidates
    # are evaluated in ONE stats-mode pallas_call per optimizer step; only the
    # (sum, sum_sq) scalars leave the kernel, never the full IWE).
    # TODO(synk): cv2.imshow / cv2.waitKey display calls are omitted.
    # NOTE: bf16 MXU operands limit FD-gradient SNR at eps=1e-3 (cost check
    # below only validates the cost/IWE values, not the FD gradients).
    input_n = jnp.asarray(input_n, jnp.float32)
    dT = jnp.asarray(dT, jnp.float32)
    eye = jnp.eye(4, dtype=jnp.float32) * eps
    pert = jnp.concatenate([eye, -eye], axis=0)                   # (8, 4)

    def step(_, m):
        costs = _cost_stats_eval(input_n, dT, m[None, :] + pert)
        grad = (costs[:4] - costs[4:]) / (2.0 * eps)
        return m - lr * grad

    m = lax.fori_loop(0, num_iters, step, jnp.ones((4,), jnp.float32))
    cf, iwe = cost_pallas(input_n, dT, m)
    im = jnp.transpose(iwe, (1, 2, 0))                            # (H, W, 1) image
    return m, cf, im


# --------------------------------- main ------------------------------------ #

if __name__ == "__main__":
    key = jax.random.PRNGKey(0)
    N, C, B, H, W = 1, 2, 9, 16, 16   # small stand-in for (h, w) = (180, 240)
    k1, k2 = jax.random.split(key)
    vox = jax.random.uniform(k1, (N, C, B, H, W), dtype=jnp.float32)
    mask = (jax.random.uniform(k2, (N, C, B, H, W)) < 0.15).astype(jnp.float32)
    input_n = vox * mask              # sparse, non-negative event voxel grid
    dT = jnp.float32(0.9)
    m0 = jnp.ones((4,), jnp.float32)

    # Run the full-IWE Pallas kernel once and block.
    cost, iwe = cost_pallas(input_n, dT, m0)
    jax.block_until_ready((cost, iwe))

    # Correctness check against the pure-JAX reference.  Tolerances account for
    # the bf16 MXU gather operands (f32 accumulation).
    cost_ref, iwe_ref = cost_reference(input_n, dT, m0)
    np.testing.assert_allclose(np.array(cost), np.array(cost_ref), rtol=5e-2, atol=5e-2)
    np.testing.assert_allclose(np.array(iwe), np.array(iwe_ref), rtol=5e-2, atol=5e-2)

    # Stats-mode (reduced-output) kernel must agree with the reference cost too.
    cost_stats = _cost_stats_eval(input_n, dT, m0[None, :])
    jax.block_until_ready(cost_stats)
    np.testing.assert_allclose(np.array(cost_stats[0]), np.array(cost_ref),
                               rtol=5e-2, atol=5e-2)

    # Short demo of the forward() optimization loop (reference uses 500 iters).
    m_fin, cf_fin, im = optimization_forward(input_n, dT, num_iters=10, lr=0.005)
    jax.block_until_ready((m_fin, cf_fin, im))

    print("KERNEL_OK")
</pallas_src>

<mosaic_0001>
module attributes {stable_mosaic.version = 11 : i64} {
  func.func @_iwe_kernel(%arg0: i32, %arg1: i32, %arg2: memref<1x4xf32, #tpu.memory_space<smem>>, %arg3: memref<1xf32, #tpu.memory_space<smem>>, %arg4: memref<256x4xf32, #tpu.memory_space<vmem>>, %arg5: memref<9x16x256xbf16, #tpu.memory_space<vmem>>, %arg6: memref<1x256x2xf32, #tpu.memory_space<vmem>>) attributes {dimension_semantics = [#tpu.dimension_semantics<parallel>, #tpu.dimension_semantics<parallel>], iteration_bounds = array<i64: 1, 1>, scalar_prefetch = 0 : i64, scratch_operands = 0 : i64, tpu.core_type = #tpu.core_type<tc>, window_params = [{transform_indices = @transform_0, window_bounds = array<i64: 1, 4>}, {transform_indices = @transform_1, window_bounds = array<i64: 1>}, {transform_indices = @transform_2, window_bounds = array<i64: 256, 4>}, {pipeline_mode = #tpu.pipeline_mode<synchronous>, transform_indices = @transform_3, window_bounds = array<i64: 9, 16, 256>}, {transform_indices = @transform_4, window_bounds = array<i64: 1, 256, 2>}]} {
    %0 = arith.index_cast %arg0 : i32 to index
    %c0 = arith.constant 0 : index
    %1 = memref.load %arg2[%0, %c0] : memref<1x4xf32, #tpu.memory_space<smem>>
    %2 = arith.index_cast %arg0 : i32 to index
    %c1 = arith.constant 1 : index
    %3 = memref.load %arg2[%2, %c1] : memref<1x4xf32, #tpu.memory_space<smem>>
    %4 = arith.index_cast %arg0 : i32 to index
    %c2 = arith.constant 2 : index
    %5 = memref.load %arg2[%4, %c2] : memref<1x4xf32, #tpu.memory_space<smem>>
    %6 = arith.index_cast %arg0 : i32 to index
    %c3 = arith.constant 3 : index
    %7 = memref.load %arg2[%6, %c3] : memref<1x4xf32, #tpu.memory_space<smem>>
    %c0_0 = arith.constant 0 : index
    %8 = memref.load %arg3[%c0_0] : memref<1xf32, #tpu.memory_space<smem>>
    %cst = arith.constant 0.111111112 : f32
    %9 = arith.mulf %8, %cst : f32
    %c0_1 = arith.constant 0 : index
    %c0_2 = arith.constant 0 : index
    %10 = vector.load %arg4[%c0_1, %c0_2] : memref<256x4xf32, #tpu.memory_space<vmem>>, vector<256x1xf32>
    %c0_3 = arith.constant 0 : index
    %c1_4 = arith.constant 1 : index
    %11 = vector.load %arg4[%c0_3, %c1_4] : memref<256x4xf32, #tpu.memory_space<vmem>>, vector<256x1xf32>
    %c0_5 = arith.constant 0 : index
    %c2_6 = arith.constant 2 : index
    %12 = vector.load %arg4[%c0_5, %c2_6] : memref<256x4xf32, #tpu.memory_space<vmem>>, vector<256x1xf32>
    %c0_7 = arith.constant 0 : index
    %c3_8 = arith.constant 3 : index
    %13 = vector.load %arg4[%c0_7, %c3_8] : memref<256x4xf32, #tpu.memory_space<vmem>>, vector<256x1xf32>
    %14 = vector.broadcast %7 : f32 to vector<256x1xf32>
    %15 = arith.mulf %14, %12 : vector<256x1xf32>
    %16 = vector.broadcast %1 : f32 to vector<256x1xf32>
    %17 = arith.addf %16, %15 : vector<256x1xf32>
    %18 = vector.broadcast %5 : f32 to vector<256x1xf32>
    %19 = arith.mulf %18, %13 : vector<256x1xf32>
    %20 = arith.subf %17, %19 : vector<256x1xf32>
    %21 = vector.broadcast %7 : f32 to vector<256x1xf32>
    %22 = arith.mulf %21, %13 : vector<256x1xf32>
    %23 = vector.broadcast %3 : f32 to vector<256x1xf32>
    %24 = arith.addf %23, %22 : vector<256x1xf32>
    %25 = vector.broadcast %5 : f32 to vector<256x1xf32>
    %26 = arith.mulf %25, %12 : vector<256x1xf32>
    %27 = arith.addf %24, %26 : vector<256x1xf32>
    %28 = tpu.iota {dimensions = array<i32: 1>} : vector<256x16xi32>
    %29 = arith.sitofp %28 : vector<256x16xi32> to vector<256x16xf32>
    %30 = tpu.iota {dimensions = array<i32: 1>} : vector<256x128xi32>
    %31 = arith.sitofp %30 : vector<256x128xi32> to vector<256x128xf32>
    %cst_9 = arith.constant 0.000000e+00 : f32
    %32 = vector.broadcast %cst_9 : f32 to vector<256x1xf32>
    %cst_10 = arith.constant 0.000000e+00 : f32
    %33 = vector.broadcast %cst_10 : f32 to vector<256x1xf32>
    %c0_i32 = arith.constant 0 : i32
    %c9_i32 = arith.constant 9 : i32
    %34 = arith.addi %c0_i32, %c9_i32 : i32
    %c1_i32 = arith.constant 1 : i32
    %35:2 = scf.for %arg7 = %c0_i32 to %34 step %c1_i32 iter_args(%arg8 = %32, %arg9 = %33) -> (vector<256x1xf32>, vector<256x1xf32>)  : i32 {
      %cst_18 = arith.constant 0.000000e+00 : f32
      %42 = arith.subf %cst_18, %9 : f32
      %43 = arith.sitofp %arg7 : i32 to f32
      %44 = arith.mulf %42, %43 : f32
      %45 = vector.broadcast %44 : f32 to vector<256x1xf32>
      %46 = arith.mulf %20, %45 : vector<256x1xf32>
      %47 = arith.addf %10, %46 : vector<256x1xf32>
      %48 = vector.broadcast %44 : f32 to vector<256x1xf32>
      %49 = arith.mulf %27, %48 : vector<256x1xf32>
      %50 = arith.addf %11, %49 : vector<256x1xf32>
      %51 = vector.broadcast %50 : vector<256x1xf32> to vector<256x16xf32>
      %52 = arith.subf %29, %51 : vector<256x16xf32>
      %53 = math.absf %52 : vector<256x16xf32>
      %cst_19 = arith.constant 1.000000e+00 : f32
      %54 = vector.broadcast %cst_19 : f32 to vector<256x16xf32>
      %55 = arith.subf %54, %53 : vector<256x16xf32>
      %cst_20 = arith.constant 0.000000e+00 : f32
      %56 = vector.broadcast %cst_20 : f32 to vector<256x16xf32>
      %57 = arith.maximumf %55, %56 : vector<256x16xf32>
      %58 = arith.truncf %57 : vector<256x16xf32> to vector<256x16xbf16>
      %59 = vector.broadcast %47 : vector<256x1xf32> to vector<256x128xf32>
      %60 = arith.subf %31, %59 : vector<256x128xf32>
      %61 = math.absf %60 : vector<256x128xf32>
      %cst_21 = arith.constant 1.000000e+00 : f32
      %62 = vector.broadcast %cst_21 : f32 to vector<256x128xf32>
      %63 = arith.subf %62, %61 : vector<256x128xf32>
      %cst_22 = arith.constant 0.000000e+00 : f32
      %64 = vector.broadcast %cst_22 : f32 to vector<256x128xf32>
      %65 = arith.maximumf %63, %64 : vector<256x128xf32>
      %66 = arith.index_cast %arg7 : i32 to index
      %c0_23 = arith.constant 0 : index
      %c0_24 = arith.constant 0 : index
      %67 = vector.load %arg5[%66, %c0_23, %c0_24] : memref<9x16x256xbf16, #tpu.memory_space<vmem>>, vector<1x16x256xbf16>
      %68 = vector.shape_cast %67 : vector<1x16x256xbf16> to vector<16x256xbf16>
      %cst_25 = arith.constant dense<0.000000e+00> : vector<256x256xf32>
      %69 = tpu.matmul %58, %68, %cst_25 {dimension_numbers = #tpu.dot_dimension_numbers<[1], [0], [0], [1], [0, 0, 1, 1], [], []>} : vector<256x16xbf16>, vector<16x256xbf16>, vector<256x256xf32> -> vector<256x256xf32>
      %70 = vector.extract_strided_slice %69 {offsets = [0, 0], sizes = [256, 128], strides = [1, 1]} : vector<256x256xf32> to vector<256x128xf32>
      %71 = arith.mulf %65, %70 : vector<256x128xf32>
      %cst_26 = arith.constant dense<0.000000e+00> : vector<256xf32>
      %72 = vector.multi_reduction <add>, %71, %cst_26 [1] : vector<256x128xf32> to vector<256xf32>
      %73 = vector.shape_cast %72 : vector<256xf32> to vector<256x1xf32>
      %74 = arith.addf %arg8, %73 : vector<256x1xf32>
      %75 = vector.extract_strided_slice %69 {offsets = [0, 128], sizes = [256, 128], strides = [1, 1]} : vector<256x256xf32> to vector<256x128xf32>
      %76 = arith.mulf %65, %75 : vector<256x128xf32>
      %cst_27 = arith.constant dense<0.000000e+00> : vector<256xf32>
      %77 = vector.multi_reduction <add>, %76, %cst_27 [1] : vector<256x128xf32> to vector<256xf32>
      %78 = vector.shape_cast %77 : vector<256xf32> to vector<256x1xf32>
      %79 = arith.addf %arg9, %78 : vector<256x1xf32>
      scf.yield %74, %79 : vector<256x1xf32>, vector<256x1xf32>
    }
    %c9_i32_11 = arith.constant 9 : i32
    %c0_12 = arith.constant 0 : index
    %c0_13 = arith.constant 0 : index
    %c0_14 = arith.constant 0 : index
    %36 = vector.load %arg6[%c0_12, %c0_13, %c0_14] : memref<1x256x2xf32, #tpu.memory_space<vmem>>, vector<1x256x1xf32>
    %37 = vector.shape_cast %36 : vector<1x256x1xf32> to vector<256x1xf32>
    %38 = vector.shape_cast %35#0 : vector<256x1xf32> to vector<1x256x1xf32>
    tpu.vector_store %arg6[%c0_12, %c0_13, %c0_14], %38 {strides = array<i32>} : memref<1x256x2xf32, #tpu.memory_space<vmem>>, vector<1x256x1xf32>,
    %c0_15 = arith.constant 0 : index
    %c0_16 = arith.constant 0 : index
    %c1_17 = arith.constant 1 : index
    %39 = vector.load %arg6[%c0_15, %c0_16, %c1_17] : memref<1x256x2xf32, #tpu.memory_space<vmem>>, vector<1x256x1xf32>
    %40 = vector.shape_cast %39 : vector<1x256x1xf32> to vector<256x1xf32>
    %41 = vector.shape_cast %35#1 : vector<256x1xf32> to vector<1x256x1xf32>
    tpu.vector_store %arg6[%c0_15, %c0_16, %c1_17], %41 {strides = array<i32>} : memref<1x256x2xf32, #tpu.memory_space<vmem>>, vector<1x256x1xf32>,
    return
  }
  func.func @transform_0(%arg0: i32, %arg1: i32) -> (i32, i32) {
    %c0_i32 = arith.constant 0 : i32
    %c0_i32_0 = arith.constant 0 : i32
    %c0_i32_1 = arith.constant 0 : i32
    return %c0_i32, %c0_i32_0 : i32, i32
  }
  func.func @transform_1(%arg0: i32, %arg1: i32) -> i32 {
    %c0_i32 = arith.constant 0 : i32
    %c0_i32_0 = arith.constant 0 : i32
    return %c0_i32 : i32
  }
  func.func @transform_2(%arg0: i32, %arg1: i32) -> (i32, i32) {
    %c0_i32 = arith.constant 0 : i32
    %c0_i32_0 = arith.constant 0 : i32
    return %arg1, %c0_i32 : i32, i32
  }
  func.func @transform_3(%arg0: i32, %arg1: i32) -> (i32, i32, i32) {
    %c0_i32 = arith.constant 0 : i32
    %c0_i32_0 = arith.constant 0 : i32
    %c0_i32_1 = arith.constant 0 : i32
    %c0_i32_2 = arith.constant 0 : i32
    return %c0_i32, %c0_i32_0, %c0_i32_1 : i32, i32, i32
  }
  func.func @transform_4(%arg0: i32, %arg1: i32) -> (i32, i32, i32) {
    %c0_i32 = arith.constant 0 : i32
    %c0_i32_0 = arith.constant 0 : i32
    return %arg0, %arg1, %c0_i32 : i32, i32, i32
  }
}

</mosaic_0001>

<llo_original>
// kernel: _cost_iwe_eval.1
$region0: #{_cost_iwe_eval.1}
  #allocation0 [shape = 'u32[]', space=smem, size = 0x4, offset = 0x4, fixed_abs, tag = 'smem constant byte address 0x4 - core index']
  #allocation1 [shape = 'u32[144,128]{1,0:T(1,128)}', space=vmem, size = 0x12000, scoped, tag = 'internal scratch']
  #allocation2 [shape = 'f32[1]{0:T(128)S(6)}', space=smem, size = 0x200, scoped, tag = 'scoped memory for _cost_iwe_eval.1']
  %s0 = inlined_call_operand.vmem [shape: f32[1,4], index: 0, kind: input, shape index: {}]
  %s1 = inlined_call_operand.<no memory space> [shape: f32[1], index: 1, kind: input, shape index: {}]
  %s2 = inlined_call_operand.vmem [shape: f32[256,4], index: 2, kind: input, shape index: {}]
  %s3 = inlined_call_operand.vmem [shape: bf16[9,16,256], index: 3, kind: input, shape index: {}]
  %s4 = inlined_call_operand.vmem [shape: f32[1,256,2], index: 4, kind: output, shape index: {}]
  %s5 = sld [smem:[#allocation0]]
  $region37: #{_cost_iwe_eval.1} parent=0
    _
  %s7 = ssub.s32 1, %s5
  %s8 = scalar_select 0, %s7, %s5
  %9 = sst [smem:[#allocation2]] %s1
  $region1: #{_cost_iwe_eval.1} parent=0
    #allocation3 [shape = 'u8[512]{0}', space=smem, size = 0x200, scoped, tag = 'input window, operand 0, single buffered']
    #allocation4 [shape = 's32[1]{0}', space=sflag, size = 0x4, scoped, tag = 'scoped memory for _cost_iwe_eval.1']
    %10 = vsyncpa [#allocation4], 0
    // Predicated region
    $region2: #{_cost_iwe_eval.1} parent=1 // pred_check
      _
    $region3: #{_cost_iwe_eval.1} parent=1 // pred_check_branch
      %12 = sbr.rel (0) target = $region5
    $region4: #{_cost_iwe_eval.1} parent=1 // pred_region
      %s14 = ssub.s32 16, 16
      %15 = vsyncadd [#allocation4], %s14
      %s17 = sshll.u32 %s0, 4
      %s18 = int_to_ptr.vmem [resolvable:$true] %s17
      %20 = dma.vmem_to_smem %s18, 16, [#allocation3], [#allocation4]
    $region5: #{_cost_iwe_eval.1} parent=1 // pred_fallthru
      _
    // Predicated region
    $region6: #{_cost_iwe_eval.1} parent=1 // pred_check
      _
    $region7: #{_cost_iwe_eval.1} parent=1 // pred_check_branch
      %22 = sbr.rel (0) target = $region9
    $region8: #{_cost_iwe_eval.1} parent=1 // pred_region
      _
    $region9: #{_cost_iwe_eval.1} parent=1 // pred_fallthru
      _
    // Predicated region
    $region10: #{_cost_iwe_eval.1} parent=1 // pred_check
      _
    $region11: #{_cost_iwe_eval.1} parent=1 // pred_check_branch
      %24 = sbr.rel (0) target = $region13
    $region12: #{_cost_iwe_eval.1} parent=1 // pred_region
      _
    $region13: #{_cost_iwe_eval.1} parent=1 // pred_fallthru
      _
    // Predicated region
    $region14: #{_cost_iwe_eval.1} parent=1 // pred_check
      _
    $region15: #{_cost_iwe_eval.1} parent=1 // pred_check_branch
      %26 = sbr.rel (0) target = $region17
    $region16: #{_cost_iwe_eval.1} parent=1 // pred_region
      _
    $region17: #{_cost_iwe_eval.1} parent=1 // pred_fallthru
      _
    // Predicated region
    $region18: #{_cost_iwe_eval.1} parent=1 // pred_check
      _
    $region19: #{_cost_iwe_eval.1} parent=1 // pred_check_branch
      %28 = sbr.rel (0) target = $region21
    $region20: #{_cost_iwe_eval.1} parent=1 // pred_region
      %29 = dma.done [#allocation4], 16
    $region21: #{_cost_iwe_eval.1} parent=1 // pred_fallthru
      _
    %30 = sfence
    %s32 = smul.u32 0, 128
    %s33 = sld [smem:[#allocation3 + %s32]]
    %s34 = sadd.s32 %s32, 1
    %s35 = sld [smem:[#allocation3 + %s34]]
    %s36 = sadd.s32 %s32, 2
    %s37 = sld [smem:[#allocation3 + %s36]]
    %s38 = sadd.s32 %s32, 3
    %s39 = sld [smem:[#allocation3 + %s38]]
    %s40 = sld [smem:[#allocation2]]
    %s41 = smul.f32 %s40, 0.11111111
    %v42 = vld [vmem:[%s2] sm:$0xff]
    %v43 = vld [vmem:[%s2 + $0x8] sm:$0xff]
    %v44 = vld [vmem:[%s2 + $0x10] sm:$0xff]
    %v45 = vld [vmem:[%s2 + $0x18] sm:$0xff]
    %v46 = vld [vmem:[%s2 + $0x20] sm:$0xff]
    %v47 = vld [vmem:[%s2 + $0x28] sm:$0xff]
    %v48 = vld [vmem:[%s2 + $0x30] sm:$0xff]
    %v49 = vld [vmem:[%s2 + $0x38] sm:$0xff]
    %v50 = vld [vmem:[%s2 + $0x40] sm:$0xff]
    %v51 = vld [vmem:[%s2 + $0x48] sm:$0xff]
    %v52 = vld [vmem:[%s2 + $0x50] sm:$0xff]
    %v53 = vld [vmem:[%s2 + $0x58] sm:$0xff]
    %v54 = vld [vmem:[%s2 + $0x60] sm:$0xff]
    %v55 = vld [vmem:[%s2 + $0x68] sm:$0xff]
    %v56 = vld [vmem:[%s2 + $0x70] sm:$0xff]
    %v57 = vld [vmem:[%s2 + $0x78] sm:$0xff]
    %v58 = vld [vmem:[%s2 + $0x80] sm:$0xff]
    %v59 = vld [vmem:[%s2 + $0x88] sm:$0xff]
    %v60 = vld [vmem:[%s2 + $0x90] sm:$0xff]
    %v61 = vld [vmem:[%s2 + $0x98] sm:$0xff]
    %v62 = vld [vmem:[%s2 + $0xa0] sm:$0xff]
    %v63 = vld [vmem:[%s2 + $0xa8] sm:$0xff]
    %v64 = vld [vmem:[%s2 + $0xb0] sm:$0xff]
    %v65 = vld [vmem:[%s2 + $0xb8] sm:$0xff]
    %v66 = vld [vmem:[%s2 + $0xc0] sm:$0xff]
    %v67 = vld [vmem:[%s2 + $0xc8] sm:$0xff]
    %v68 = vld [vmem:[%s2 + $0xd0] sm:$0xff]
    %v69 = vld [vmem:[%s2 + $0xd8] sm:$0xff]
    %v70 = vld [vmem:[%s2 + $0xe0] sm:$0xff]
    %v71 = vld [vmem:[%s2 + $0xe8] sm:$0xff]
    %v72 = vld [vmem:[%s2 + $0xf0] sm:$0xff]
    %v73 = vld [vmem:[%s2 + $0xf8] sm:$0xff]
    %v74 = vstv %s39
    %v75 = vmul.f32 %v74, %v42
    %v76 = vmul.f32 %v74, %v43
    %v77 = vmul.f32 %v74, %v44
    %v78 = vmul.f32 %v74, %v45
    %v79 = vmul.f32 %v74, %v46
    %v80 = vmul.f32 %v74, %v47
    %v81 = vmul.f32 %v74, %v48
    %v82 = vmul.f32 %v74, %v49
    %v83 = vmul.f32 %v74, %v50
    %v84 = vmul.f32 %v74, %v51
    %v85 = vmul.f32 %v74, %v52
    %v86 = vmul.f32 %v74, %v53
    %v87 = vmul.f32 %v74, %v54
    %v88 = vmul.f32 %v74, %v55
    %v89 = vmul.f32 %v74, %v56
    %v90 = vmul.f32 %v74, %v57
    %v91 = vmul.f32 %v74, %v58
    %v92 = vmul.f32 %v74, %v59
    %v93 = vmul.f32 %v74, %v60
    %v94 = vmul.f32 %v74, %v61
    %v95 = vmul.f32 %v74, %v62
    %v96 = vmul.f32 %v74, %v63
    %v97 = vmul.f32 %v74, %v64
    %v98 = vmul.f32 %v74, %v65
    %v99 = vmul.f32 %v74, %v66
    %v100 = vmul.f32 %v74, %v67
    %v101 = vmul.f32 %v74, %v68
    %v102 = vmul.f32 %v74, %v69
    %v103 = vmul.f32 %v74, %v70
    %v104 = vmul.f32 %v74, %v71
    %v105 = vmul.f32 %v74, %v72
    %v106 = vmul.f32 %v74, %v73
    %v107 = vstv %s33
    %v108 = vadd.f32 %v107, %v75
    %v109 = vadd.f32 %v107, %v76
    %v110 = vadd.f32 %v107, %v77
    %v111 = vadd.f32 %v107, %v78
    %v112 = vadd.f32 %v107, %v79
    %v113 = vadd.f32 %v107, %v80
    %v114 = vadd.f32 %v107, %v81
    %v115 = vadd.f32 %v107, %v82
    %v116 = vadd.f32 %v107, %v83
    %v117 = vadd.f32 %v107, %v84
    %v118 = vadd.f32 %v107, %v85
    %v119 = vadd.f32 %v107, %v86
    %v120 = vadd.f32 %v107, %v87
    %v121 = vadd.f32 %v107, %v88
    %v122 = vadd.f32 %v107, %v89
    %v123 = vadd.f32 %v107, %v90
    %v124 = vadd.f32 %v107, %v91
    %v125 = vadd.f32 %v107, %v92
    %v126 = vadd.f32 %v107, %v93
    %v127 = vadd.f32 %v107, %v94
    %v128 = vadd.f32 %v107, %v95
    %v129 = vadd.f32 %v107, %v96
    %v130 = vadd.f32 %v107, %v97
    %v131 = vadd.f32 %v107, %v98
    %v132 = vadd.f32 %v107, %v99
    %v133 = vadd.f32 %v107, %v100
    %v134 = vadd.f32 %v107, %v101
    %v135 = vadd.f32 %v107, %v102
    %v136 = vadd.f32 %v107, %v103
    %v137 = vadd.f32 %v107, %v104
    %v138 = vadd.f32 %v107, %v105
    %v139 = vadd.f32 %v107, %v106
    %v140 = vstv %s37
    %v141 = vmul.f32 %v140, %v42
    %v142 = vmul.f32 %v140, %v43
    %v143 = vmul.f32 %v140, %v44
    %v144 = vmul.f32 %v140, %v45
    %v145 = vmul.f32 %v140, %v46
    %v146 = vmul.f32 %v140, %v47
    %v147 = vmul.f32 %v140, %v48
    %v148 = vmul.f32 %v140, %v49
    %v149 = vmul.f32 %v140, %v50
    %v150 = vmul.f32 %v140, %v51
    %v151 = vmul.f32 %v140, %v52
    %v152 = vmul.f32 %v140, %v53
    %v153 = vmul.f32 %v140, %v54
    %v154 = vmul.f32 %v140, %v55
    %v155 = vmul.f32 %v140, %v56
    %v156 = vmul.f32 %v140, %v57
    %v157 = vmul.f32 %v140, %v58
    %v158 = vmul.f32 %v140, %v59
    %v159 = vmul.f32 %v140, %v60
    %v160 = vmul.f32 %v140, %v61
    %v161 = vmul.f32 %v140, %v62
    %v162 = vmul.f32 %v140, %v63
    %v163 = vmul.f32 %v140, %v64
    %v164 = vmul.f32 %v140, %v65
    %v165 = vmul.f32 %v140, %v66
    %v166 = vmul.f32 %v140, %v67
    %v167 = vmul.f32 %v140, %v68
    %v168 = vmul.f32 %v140, %v69
    %v169 = vmul.f32 %v140, %v70
    %v170 = vmul.f32 %v140, %v71
    %v171 = vmul.f32 %v140, %v72
    %v172 = vmul.f32 %v140, %v73
    %205 = vrot.lane.b32.xlu0 %v141, 127
    %v206 = vpop.permute.xlu0 %205
    %207 = vrot.lane.b32.xlu0 %v142, 127
    %v208 = vpop.permute.xlu0 %207
    %209 = vrot.lane.b32.xlu0 %v143, 127
    %v210 = vpop.permute.xlu0 %209
    %211 = vrot.lane.b32.xlu0 %v144, 127
    %v212 = vpop.permute.xlu0 %211
    %213 = vrot.lane.b32.xlu0 %v145, 127
    %v214 = vpop.permute.xlu0 %213
    %215 = vrot.lane.b32.xlu0 %v146, 127
    %v216 = vpop.permute.xlu0 %215
    %217 = vrot.lane.b32.xlu0 %v147, 127
    %v218 = vpop.permute.xlu0 %217
    %219 = vrot.lane.b32.xlu0 %v148, 127
    %v220 = vpop.permute.xlu0 %219
    %221 = vrot.lane.b32.xlu0 %v149, 127
    %v222 = vpop.permute.xlu0 %221
    %223 = vrot.lane.b32.xlu0 %v150, 127
    %v224 = vpop.permute.xlu0 %223
    %225 = vrot.lane.b32.xlu0 %v151, 127
    %v226 = vpop.permute.xlu0 %225
    %227 = vrot.lane.b32.xlu0 %v152, 127
    %v228 = vpop.permute.xlu0 %227
    %229 = vrot.lane.b32.xlu0 %v153, 127
    %v230 = vpop.permute.xlu0 %229
    %231 = vrot.lane.b32.xlu0 %v154, 127
    %v232 = vpop.permute.xlu0 %231
    %233 = vrot.lane.b32.xlu0 %v155, 127
    %v234 = vpop.permute.xlu0 %233
    %235 = vrot.lane.b32.xlu0 %v156, 127
    %v236 = vpop.permute.xlu0 %235
    %237 = vrot.lane.b32.xlu0 %v157, 127
    %v238 = vpop.permute.xlu0 %237
    %239 = vrot.lane.b32.xlu0 %v158, 127
    %v240 = vpop.permute.xlu0 %239
    %241 = vrot.lane.b32.xlu0 %v159, 127
    %v242 = vpop.permute.xlu0 %241
    %243 = vrot.lane.b32.xlu0 %v160, 127
    %v244 = vpop.permute.xlu0 %243
    %245 = vrot.lane.b32.xlu0 %v161, 127
    %v246 = vpop.permute.xlu0 %245
    %247 = vrot.lane.b32.xlu0 %v162, 127
    %v248 = vpop.permute.xlu0 %247
    %249 = vrot.lane.b32.xlu0 %v163, 127
    %v250 = vpop.permute.xlu0 %249
    %251 = vrot.lane.b32.xlu0 %v164, 127
    %v252 = vpop.permute.xlu0 %251
    %253 = vrot.lane.b32.xlu0 %v165, 127
    %v254 = vpop.permute.xlu0 %253
    %255 = vrot.lane.b32.xlu0 %v166, 127
    %v256 = vpop.permute.xlu0 %255
    %257 = vrot.lane.b32.xlu0 %v167, 127
    %v258 = vpop.permute.xlu0 %257
    %259 = vrot.lane.b32.xlu0 %v168, 127
    %v260 = vpop.permute.xlu0 %259
    %261 = vrot.lane.b32.xlu0 %v169, 127
    %v262 = vpop.permute.xlu0 %261
    %263 = vrot.lane.b32.xlu0 %v170, 127
    %v264 = vpop.permute.xlu0 %263
    %265 = vrot.lane.b32.xlu0 %v171, 127
    %v266 = vpop.permute.xlu0 %265
    %267 = vrot.lane.b32.xlu0 %v172, 127
    %v268 = vpop.permute.xlu0 %267
    %v301 = vsub.f32 %v108, %v206
    %v302 = vsub.f32 %v109, %v208
    %v303 = vsub.f32 %v110, %v210
    %v304 = vsub.f32 %v111, %v212
    %v305 = vsub.f32 %v112, %v214
    %v306 = vsub.f32 %v113, %v216
    %v307 = vsub.f32 %v114, %v218
    %v308 = vsub.f32 %v115, %v220
    %v309 = vsub.f32 %v116, %v222
    %v310 = vsub.f32 %v117, %v224
    %v311 = vsub.f32 %v118, %v226
    %v312 = vsub.f32 %v119, %v228
    %v313 = vsub.f32 %v120, %v230
    %v314 = vsub.f32 %v121, %v232
    %v315 = vsub.f32 %v122, %v234
    %v316 = vsub.f32 %v123, %v236
    %v317 = vsub.f32 %v124, %v238
    %v318 = vsub.f32 %v125, %v240
    %v319 = vsub.f32 %v126, %v242
    %v320 = vsub.f32 %v127, %v244
    %v321 = vsub.f32 %v128, %v246
    %v322 = vsub.f32 %v129, %v248
    %v323 = vsub.f32 %v130, %v250
    %v324 = vsub.f32 %v131, %v252
    %v325 = vsub.f32 %v132, %v254
    %v326 = vsub.f32 %v133, %v256
    %v327 = vsub.f32 %v134, %v258
    %v328 = vsub.f32 %v135, %v260
    %v329 = vsub.f32 %v136, %v262
    %v330 = vsub.f32 %v137, %v264
    %v331 = vsub.f32 %v138, %v266
    %v332 = vsub.f32 %v139, %v268
    %v333 = vstv %s35
    %v334 = vadd.f32 %v333, %v75
    %v335 = vadd.f32 %v333, %v76
    %v336 = vadd.f32 %v333, %v77
    %v337 = vadd.f32 %v333, %v78
    %v338 = vadd.f32 %v333, %v79
    %v339 = vadd.f32 %v333, %v80
    %v340 = vadd.f32 %v333, %v81
    %v341 = vadd.f32 %v333, %v82
    %v342 = vadd.f32 %v333, %v83
    %v343 = vadd.f32 %v333, %v84
    %v344 = vadd.f32 %v333, %v85
    %v345 = vadd.f32 %v333, %v86
    %v346 = vadd.f32 %v333, %v87
    %v347 = vadd.f32 %v333, %v88
    %v348 = vadd.f32 %v333, %v89
    %v349 = vadd.f32 %v333, %v90
    %v350 = vadd.f32 %v333, %v91
    %v351 = vadd.f32 %v333, %v92
    %v352 = vadd.f32 %v333, %v93
    %v353 = vadd.f32 %v333, %v94
    %v354 = vadd.f32 %v333, %v95
    %v355 = vadd.f32 %v333, %v96
    %v356 = vadd.f32 %v333, %v97
    %v357 = vadd.f32 %v333, %v98
    %v358 = vadd.f32 %v333, %v99
    %v359 = vadd.f32 %v333, %v100
    %v360 = vadd.f32 %v333, %v101
    %v361 = vadd.f32 %v333, %v102
    %v362 = vadd.f32 %v333, %v103
    %v363 = vadd.f32 %v333, %v104
    %v364 = vadd.f32 %v333, %v105
    %v365 = vadd.f32 %v333, %v106
    %366 = vrot.lane.b32.xlu0 %v141, 1
    %v367 = vpop.permute.xlu0 %366
    %368 = vrot.lane.b32.xlu0 %v142, 1
    %v369 = vpop.permute.xlu0 %368
    %370 = vrot.lane.b32.xlu0 %v143, 1
    %v371 = vpop.permute.xlu0 %370
    %372 = vrot.lane.b32.xlu0 %v144, 1
    %v373 = vpop.permute.xlu0 %372
    %374 = vrot.lane.b32.xlu0 %v145, 1
    %v375 = vpop.permute.xlu0 %374
    %376 = vrot.lane.b32.xlu0 %v146, 1
    %v377 = vpop.permute.xlu0 %376
    %378 = vrot.lane.b32.xlu0 %v147, 1
    %v379 = vpop.permute.xlu0 %378
    %380 = vrot.lane.b32.xlu0 %v148, 1
    %v381 = vpop.permute.xlu0 %380
    %382 = vrot.lane.b32.xlu0 %v149, 1
    %v383 = vpop.permute.xlu0 %382
    %384 = vrot.lane.b32.xlu0 %v150, 1
    %v385 = vpop.permute.xlu0 %384
    %386 = vrot.lane.b32.xlu0 %v151, 1
    %v387 = vpop.permute.xlu0 %386
    %388 = vrot.lane.b32.xlu0 %v152, 1
    %v389 = vpop.permute.xlu0 %388
    %390 = vrot.lane.b32.xlu0 %v153, 1
    %v391 = vpop.permute.xlu0 %390
    %392 = vrot.lane.b32.xlu0 %v154, 1
    %v393 = vpop.permute.xlu0 %392
    %394 = vrot.lane.b32.xlu0 %v155, 1
    %v395 = vpop.permute.xlu0 %394
    %396 = vrot.lane.b32.xlu0 %v156, 1
    %v397 = vpop.permute.xlu0 %396
    %398 = vrot.lane.b32.xlu0 %v157, 1
    %v399 = vpop.permute.xlu0 %398
    %400 = vrot.lane.b32.xlu0 %v158, 1
    %v401 = vpop.permute.xlu0 %400
    %402 = vrot.lane.b32.xlu0 %v159, 1
    %v403 = vpop.permute.xlu0 %402
    %404 = vrot.lane.b32.xlu0 %v160, 1
    %v405 = vpop.permute.xlu0 %404
    %406 = vrot.lane.b32.xlu0 %v161, 1
    %v407 = vpop.permute.xlu0 %406
    %408 = vrot.lane.b32.xlu0 %v162, 1
    %v409 = vpop.permute.xlu0 %408
    %410 = vrot.lane.b32.xlu0 %v163, 1
    %v411 = vpop.permute.xlu0 %410
    %412 = vrot.lane.b32.xlu0 %v164, 1
    %v413 = vpop.permute.xlu0 %412
    %414 = vrot.lane.b32.xlu0 %v165, 1
    %v415 = vpop.permute.xlu0 %414
    %416 = vrot.lane.b32.xlu0 %v166, 1
    %v417 = vpop.permute.xlu0 %416
    %418 = vrot.lane.b32.xlu0 %v167, 1
    %v419 = vpop.permute.xlu0 %418
    %420 = vrot.lane.b32.xlu0 %v168, 1
    %v421 = vpop.permute.xlu0 %420
    %422 = vrot.lane.b32.xlu0 %v169, 1
    %v423 = vpop.permute.xlu0 %422
    %424 = vrot.lane.b32.xlu0 %v170, 1
    %v425 = vpop.permute.xlu0 %424
    %426 = vrot.lane.b32.xlu0 %v171, 1
    %v427 = vpop.permute.xlu0 %426
    %428 = vrot.lane.b32.xlu0 %v172, 1
    %v429 = vpop.permute.xlu0 %428
    %v462 = vadd.f32 %v334, %v367
    %v463 = vadd.f32 %v335, %v369
    %v464 = vadd.f32 %v336, %v371
    %v465 = vadd.f32 %v337, %v373
    %v466 = vadd.f32 %v338, %v375
    %v467 = vadd.f32 %v339, %v377
    %v468 = vadd.f32 %v340, %v379
    %v469 = vadd.f32 %v341, %v381
    %v470 = vadd.f32 %v342, %v383
    %v471 = vadd.f32 %v343, %v385
    %v472 = vadd.f32 %v344, %v387
    %v473 = vadd.f32 %v345, %v389
    %v474 = vadd.f32 %v346, %v391
    %v475 = vadd.f32 %v347, %v393
    %v476 = vadd.f32 %v348, %v395
    %v477 = vadd.f32 %v349, %v397
    %v478 = vadd.f32 %v350, %v399
    %v479 = vadd.f32 %v351, %v401
    %v480 = vadd.f32 %v352, %v403
    %v481 = vadd.f32 %v353, %v405
    %v482 = vadd.f32 %v354, %v407
    %v483 = vadd.f32 %v355, %v409
    %v484 = vadd.f32 %v356, %v411
    %v485 = vadd.f32 %v357, %v413
    %v486 = vadd.f32 %v358, %v415
    %v487 = vadd.f32 %v359, %v417
    %v488 = vadd.f32 %v360, %v419
    %v489 = vadd.f32 %v361, %v421
    %v490 = vadd.f32 %v362, %v423
    %v491 = vadd.f32 %v363, %v425
    %v492 = vadd.f32 %v364, %v427
    %v493 = vadd.f32 %v365, %v429
    %v494 = vlaneseq
    %v495 = vand.u32 %v494, 127
    %v496 = vcvt.s32.f32 %v495
    loop: start=0, step=1, limit=9
    $region22: #{_cost_iwe_eval.1} parent=1 // loop_pre_header
      _
    $region23: #{_cost_iwe_eval.1} parent=1 // loop_header
      %s498 = sphi 0, %s502
      %p499 = scmp.ge.s32.totalorder %s498, 9
      %v503 = vphi 0.0, %v1900
      %v504 = vphi 0.0, %v1901
      %v505 = vphi 0.0, %v1902
      %v506 = vphi 0.0, %v1903
      %v507 = vphi 0.0, %v1904
      %v508 = vphi 0.0, %v1905
      %v509 = vphi 0.0, %v1906
      %v510 = vphi 0.0, %v1907
      %v511 = vphi 0.0, %v1908
      %v512 = vphi 0.0, %v1909
      %v513 = vphi 0.0, %v1910
      %v514 = vphi 0.0, %v1911
      %v515 = vphi 0.0, %v1912
      %v516 = vphi 0.0, %v1913
      %v517 = vphi 0.0, %v1914
      %v518 = vphi 0.0, %v1915
      %v519 = vphi 0.0, %v1916
      %v520 = vphi 0.0, %v1917
      %v521 = vphi 0.0, %v1918
      %v522 = vphi 0.0, %v1919
      %v523 = vphi 0.0, %v1920
      %v524 = vphi 0.0, %v1921
      %v525 = vphi 0.0, %v1922
      %v526 = vphi 0.0, %v1923
      %v527 = vphi 0.0, %v1924
      %v528 = vphi 0.0, %v1925
      %v529 = vphi 0.0, %v1926
      %v530 = vphi 0.0, %v1927
      %v531 = vphi 0.0, %v1928
      %v532 = vphi 0.0, %v1929
      %v533 = vphi 0.0, %v1930
      %v534 = vphi 0.0, %v1931
      %v535 = vphi 0.0, %v2028
      %v536 = vphi 0.0, %v2029
      %v537 = vphi 0.0, %v2030
      %v538 = vphi 0.0, %v2031
      %v539 = vphi 0.0, %v2032
      %v540 = vphi 0.0, %v2033
      %v541 = vphi 0.0, %v2034
      %v542 = vphi 0.0, %v2035
      %v543 = vphi 0.0, %v2036
      %v544 = vphi 0.0, %v2037
      %v545 = vphi 0.0, %v2038
      %v546 = vphi 0.0, %v2039
      %v547 = vphi 0.0, %v2040
      %v548 = vphi 0.0, %v2041
      %v549 = vphi 0.0, %v2042
      %v550 = vphi 0.0, %v2043
      %v551 = vphi 0.0, %v2044
      %v552 = vphi 0.0, %v2045
      %v553 = vphi 0.0, %v2046
      %v554 = vphi 0.0, %v2047
      %v555 = vphi 0.0, %v2048
      %v556 = vphi 0.0, %v2049
      %v557 = vphi 0.0, %v2050
      %v558 = vphi 0.0, %v2051
      %v559 = vphi 0.0, %v2052
      %v560 = vphi 0.0, %v2053
      %v561 = vphi 0.0, %v2054
      %v562 = vphi 0.0, %v2055
      %v563 = vphi 0.0, %v2056
      %v564 = vphi 0.0, %v2057
      %v565 = vphi 0.0, %v2058
      %v566 = vphi 0.0, %v2059
    $region24: #{_cost_iwe_eval.1} parent=1 // loop_header_branch
      %501 = sbr.rel (%p499) target = $region28
    $region25: #{_cost_iwe_eval.1} parent=1 // loop_body
      %s567 = ssub.f32 0.0, %s41
      %s568 = scvt.s32.f32 %s498
      %s569 = smul.f32 %s567, %s568
      %v570 = vstv %s569
      %v571 = vmul.f32 %v301, %v570
      %v572 = vmul.f32 %v302, %v570
      %v573 = vmul.f32 %v303, %v570
      %v574 = vmul.f32 %v304, %v570
      %v575 = vmul.f32 %v305, %v570
      %v576 = vmul.f32 %v306, %v570
      %v577 = vmul.f32 %v307, %v570
      %v578 = vmul.f32 %v308, %v570
      %v579 = vmul.f32 %v309, %v570
      %v580 = vmul.f32 %v310, %v570
      %v581 = vmul.f32 %v311, %v570
      %v582 = vmul.f32 %v312, %v570
      %v583 = vmul.f32 %v313, %v570
      %v584 = vmul.f32 %v314, %v570
      %v585 = vmul.f32 %v315, %v570
      %v586 = vmul.f32 %v316, %v570
      %v587 = vmul.f32 %v317, %v570
      %v588 = vmul.f32 %v318, %v570
      %v589 = vmul.f32 %v319, %v570
      %v590 = vmul.f32 %v320, %v570
      %v591 = vmul.f32 %v321, %v570
      %v592 = vmul.f32 %v322, %v570
      %v593 = vmul.f32 %v323, %v570
      %v594 = vmul.f32 %v324, %v570
      %v595 = vmul.f32 %v325, %v570
      %v596 = vmul.f32 %v326, %v570
      %v597 = vmul.f32 %v327, %v570
      %v598 = vmul.f32 %v328, %v570
      %v599 = vmul.f32 %v329, %v570
      %v600 = vmul.f32 %v330, %v570
      %v601 = vmul.f32 %v331, %v570
      %v602 = vmul.f32 %v332, %v570
      %635 = vrot.lane.b32.xlu0 %v571, 126
      %v636 = vpop.permute.xlu0 %635
      %637 = vrot.lane.b32.xlu0 %v572, 126
      %v638 = vpop.permute.xlu0 %637
      %639 = vrot.lane.b32.xlu0 %v573, 126
      %v640 = vpop.permute.xlu0 %639
      %641 = vrot.lane.b32.xlu0 %v574, 126
      %v642 = vpop.permute.xlu0 %641
      %643 = vrot.lane.b32.xlu0 %v575, 126
      %v644 = vpop.permute.xlu0 %643
      %645 = vrot.lane.b32.xlu0 %v576, 126
      %v646 = vpop.permute.xlu0 %645
      %647 = vrot.lane.b32.xlu0 %v577, 126
      %v648 = vpop.permute.xlu0 %647
      %649 = vrot.lane.b32.xlu0 %v578, 126
      %v650 = vpop.permute.xlu0 %649
      %651 = vrot.lane.b32.xlu0 %v579, 126
      %v652 = vpop.permute.xlu0 %651
      %653 = vrot.lane.b32.xlu0 %v580, 126
      %v654 = vpop.permute.xlu0 %653
      %655 = vrot.lane.b32.xlu0 %v581, 126
      %v656 = vpop.permute.xlu0 %655
      %657 = vrot.lane.b32.xlu0 %v582, 126
      %v658 = vpop.permute.xlu0 %657
      %659 = vrot.lane.b32.xlu0 %v583, 126
      %v660 = vpop.permute.xlu0 %659
      %661 = vrot.lane.b32.xlu0 %v584, 126
      %v662 = vpop.permute.xlu0 %661
      %663 = vrot.lane.b32.xlu0 %v585, 126
      %v664 = vpop.permute.xlu0 %663
      %665 = vrot.lane.b32.xlu0 %v586, 126
      %v666 = vpop.permute.xlu0 %665
      %667 = vrot.lane.b32.xlu0 %v587, 126
      %v668 = vpop.permute.xlu0 %667
      %669 = vrot.lane.b32.xlu0 %v588, 126
      %v670 = vpop.permute.xlu0 %669
      %671 = vrot.lane.b32.xlu0 %v589, 126
      %v672 = vpop.permute.xlu0 %671
      %673 = vrot.lane.b32.xlu0 %v590, 126
      %v674 = vpop.permute.xlu0 %673
      %675 = vrot.lane.b32.xlu0 %v591, 126
      %v676 = vpop.permute.xlu0 %675
      %677 = vrot.lane.b32.xlu0 %v592, 126
      %v678 = vpop.permute.xlu0 %677
      %679 = vrot.lane.b32.xlu0 %v593, 126
      %v680 = vpop.permute.xlu0 %679
      %681 = vrot.lane.b32.xlu0 %v594, 126
      %v682 = vpop.permute.xlu0 %681
      %683 = vrot.lane.b32.xlu0 %v595, 126
      %v684 = vpop.permute.xlu0 %683
      %685 = vrot.lane.b32.xlu0 %v596, 126
      %v686 = vpop.permute.xlu0 %685
      %687 = vrot.lane.b32.xlu0 %v597, 126
      %v688 = vpop.permute.xlu0 %687
      %689 = vrot.lane.b32.xlu0 %v598, 126
      %v690 = vpop.permute.xlu0 %689
      %691 = vrot.lane.b32.xlu0 %v599, 126
      %v692 = vpop.permute.xlu0 %691
      %693 = vrot.lane.b32.xlu0 %v600, 126
      %v694 = vpop.permute.xlu0 %693
      %695 = vrot.lane.b32.xlu0 %v601, 126
      %v696 = vpop.permute.xlu0 %695
      %697 = vrot.lane.b32.xlu0 %v602, 126
      %v698 = vpop.permute.xlu0 %697
      %v731 = vadd.f32 %v42, %v636
      %v732 = vadd.f32 %v43, %v638
      %v733 = vadd.f32 %v44, %v640
      %v734 = vadd.f32 %v45, %v642
      %v735 = vadd.f32 %v46, %v644
      %v736 = vadd.f32 %v47, %v646
      %v737 = vadd.f32 %v48, %v648
      %v738 = vadd.f32 %v49, %v650
      %v739 = vadd.f32 %v50, %v652
      %v740 = vadd.f32 %v51, %v654
      %v741 = vadd.f32 %v52, %v656
      %v742 = vadd.f32 %v53, %v658
      %v743 = vadd.f32 %v54, %v660
      %v744 = vadd.f32 %v55, %v662
      %v745 = vadd.f32 %v56, %v664
      %v746 = vadd.f32 %v57, %v666
      %v747 = vadd.f32 %v58, %v668
      %v748 = vadd.f32 %v59, %v670
      %v749 = vadd.f32 %v60, %v672
      %v750 = vadd.f32 %v61, %v674
      %v751 = vadd.f32 %v62, %v676
      %v752 = vadd.f32 %v63, %v678
      %v753 = vadd.f32 %v64, %v680
      %v754 = vadd.f32 %v65, %v682
      %v755 = vadd.f32 %v66, %v684
      %v756 = vadd.f32 %v67, %v686
      %v757 = vadd.f32 %v68, %v688
      %v758 = vadd.f32 %v69, %v690
      %v759 = vadd.f32 %v70, %v692
      %v760 = vadd.f32 %v71, %v694
      %v761 = vadd.f32 %v72, %v696
      %v762 = vadd.f32 %v73, %v698
      %v763 = vmul.f32 %v462, %v570
      %v764 = vmul.f32 %v463, %v570
      %v765 = vmul.f32 %v464, %v570
      %v766 = vmul.f32 %v465, %v570
      %v767 = vmul.f32 %v466, %v570
      %v768 = vmul.f32 %v467, %v570
      %v769 = vmul.f32 %v468, %v570
      %v770 = vmul.f32 %v469, %v570
      %v771 = vmul.f32 %v470, %v570
      %v772 = vmul.f32 %v471, %v570
      %v773 = vmul.f32 %v472, %v570
      %v774 = vmul.f32 %v473, %v570
      %v775 = vmul.f32 %v474, %v570
      %v776 = vmul.f32 %v475, %v570
      %v777 = vmul.f32 %v476, %v570
      %v778 = vmul.f32 %v477, %v570
      %v779 = vmul.f32 %v478, %v570
      %v780 = vmul.f32 %v479, %v570
      %v781 = vmul.f32 %v480, %v570
      %v782 = vmul.f32 %v481, %v570
      %v783 = vmul.f32 %v482, %v570
      %v784 = vmul.f32 %v483, %v570
      %v785 = vmul.f32 %v484, %v570
      %v786 = vmul.f32 %v485, %v570
      %v787 = vmul.f32 %v486, %v570
      %v788 = vmul.f32 %v487, %v570
      %v789 = vmul.f32 %v488, %v570
      %v790 = vmul.f32 %v489, %v570
      %v791 = vmul.f32 %v490, %v570
      %v792 = vmul.f32 %v491, %v570
      %v793 = vmul.f32 %v492, %v570
      %v794 = vmul.f32 %v493, %v570
      %827 = vrot.lane.b32.xlu0 %v763, 126
      %v828 = vpop.permute.xlu0 %827
      %829 = vrot.lane.b32.xlu0 %v764, 126
      %v830 = vpop.permute.xlu0 %829
      %831 = vrot.lane.b32.xlu0 %v765, 126
      %v832 = vpop.permute.xlu0 %831
      %833 = vrot.lane.b32.xlu0 %v766, 126
      %v834 = vpop.permute.xlu0 %833
      %835 = vrot.lane.b32.xlu0 %v767, 126
      %v836 = vpop.permute.xlu0 %835
      %837 = vrot.lane.b32.xlu0 %v768, 126
      %v838 = vpop.permute.xlu0 %837
      %839 = vrot.lane.b32.xlu0 %v769, 126
      %v840 = vpop.permute.xlu0 %839
      %841 = vrot.lane.b32.xlu0 %v770, 126
      %v842 = vpop.permute.xlu0 %841
      %843 = vrot.lane.b32.xlu0 %v771, 126
      %v844 = vpop.permute.xlu0 %843
      %845 = vrot.lane.b32.xlu0 %v772, 126
      %v846 = vpop.permute.xlu0 %845
      %847 = vrot.lane.b32.xlu0 %v773, 126
      %v848 = vpop.permute.xlu0 %847
      %849 = vrot.lane.b32.xlu0 %v774, 126
      %v850 = vpop.permute.xlu0 %849
      %851 = vrot.lane.b32.xlu0 %v775, 126
      %v852 = vpop.permute.xlu0 %851
      %853 = vrot.lane.b32.xlu0 %v776, 126
      %v854 = vpop.permute.xlu0 %853
      %855 = vrot.lane.b32.xlu0 %v777, 126
      %v856 = vpop.permute.xlu0 %855
      %857 = vrot.lane.b32.xlu0 %v778, 126
      %v858 = vpop.permute.xlu0 %857
      %859 = vrot.lane.b32.xlu0 %v779, 126
      %v860 = vpop.permute.xlu0 %859
      %861 = vrot.lane.b32.xlu0 %v780, 126
      %v862 = vpop.permute.xlu0 %861
      %863 = vrot.lane.b32.xlu0 %v781, 126
      %v864 = vpop.permute.xlu0 %863
      %865 = vrot.lane.b32.xlu0 %v782, 126
      %v866 = vpop.permute.xlu0 %865
      %867 = vrot.lane.b32.xlu0 %v783, 126
      %v868 = vpop.permute.xlu0 %867
      %869 = vrot.lane.b32.xlu0 %v784, 126
      %v870 = vpop.permute.xlu0 %869
      %871 = vrot.lane.b32.xlu0 %v785, 126
      %v872 = vpop.permute.xlu0 %871
      %873 = vrot.lane.b32.xlu0 %v786, 126
      %v874 = vpop.permute.xlu0 %873
      %875 = vrot.lane.b32.xlu0 %v787, 126
      %v876 = vpop.permute.xlu0 %875
      %877 = vrot.lane.b32.xlu0 %v788, 126
      %v878 = vpop.permute.xlu0 %877
      %879 = vrot.lane.b32.xlu0 %v789, 126
      %v880 = vpop.permute.xlu0 %879
      %881 = vrot.lane.b32.xlu0 %v790, 126
      %v882 = vpop.permute.xlu0 %881
      %883 = vrot.lane.b32.xlu0 %v791, 126
      %v884 = vpop.permute.xlu0 %883
      %885 = vrot.lane.b32.xlu0 %v792, 126
      %v886 = vpop.permute.xlu0 %885
      %887 = vrot.lane.b32.xlu0 %v793, 126
      %v888 = vpop.permute.xlu0 %887
      %889 = vrot.lane.b32.xlu0 %v794, 126
      %v890 = vpop.permute.xlu0 %889
      %v923 = vadd.f32 %v42, %v828
      %v924 = vadd.f32 %v43, %v830
      %v925 = vadd.f32 %v44, %v832
      %v926 = vadd.f32 %v45, %v834
      %v927 = vadd.f32 %v46, %v836
      %v928 = vadd.f32 %v47, %v838
      %v929 = vadd.f32 %v48, %v840
      %v930 = vadd.f32 %v49, %v842
      %v931 = vadd.f32 %v50, %v844
      %v932 = vadd.f32 %v51, %v846
      %v933 = vadd.f32 %v52, %v848
      %v934 = vadd.f32 %v53, %v850
      %v935 = vadd.f32 %v54, %v852
      %v936 = vadd.f32 %v55, %v854
      %v937 = vadd.f32 %v56, %v856
      %v938 = vadd.f32 %v57, %v858
      %v939 = vadd.f32 %v58, %v860
      %v940 = vadd.f32 %v59, %v862
      %v941 = vadd.f32 %v60, %v864
      %v942 = vadd.f32 %v61, %v866
      %v943 = vadd.f32 %v62, %v868
      %v944 = vadd.f32 %v63, %v870
      %v945 = vadd.f32 %v64, %v872
      %v946 = vadd.f32 %v65, %v874
      %v947 = vadd.f32 %v66, %v876
      %v948 = vadd.f32 %v67, %v878
      %v949 = vadd.f32 %v68, %v880
      %v950 = vadd.f32 %v69, %v882
      %v951 = vadd.f32 %v70, %v884
      %v952 = vadd.f32 %v71, %v886
      %v953 = vadd.f32 %v72, %v888
      %v954 = vadd.f32 %v73, %v890
      %956 = vset.pattern.permute.xlu0 1
      %957 = vperm.xlu0 %956, %v923
      %v958 = vpop.permute.xlu0 %957
      %961 = vset.pattern.permute.xlu0 1
      %962 = vperm.xlu0 %961, %v924
      %v963 = vpop.permute.xlu0 %962
      %966 = vset.pattern.permute.xlu0 1
      %967 = vperm.xlu0 %966, %v925
      %v968 = vpop.permute.xlu0 %967
      %971 = vset.pattern.permute.xlu0 1
      %972 = vperm.xlu0 %971, %v926
      %v973 = vpop.permute.xlu0 %972
      %976 = vset.pattern.permute.xlu0 1
      %977 = vperm.xlu0 %976, %v927
      %v978 = vpop.permute.xlu0 %977
      %981 = vset.pattern.permute.xlu0 1
      %982 = vperm.xlu0 %981, %v928
      %v983 = vpop.permute.xlu0 %982
      %986 = vset.pattern.permute.xlu0 1
      %987 = vperm.xlu0 %986, %v929
      %v988 = vpop.permute.xlu0 %987
      %991 = vset.pattern.permute.xlu0 1
      %992 = vperm.xlu0 %991, %v930
      %v993 = vpop.permute.xlu0 %992
      %996 = vset.pattern.permute.xlu0 1
      %997 = vperm.xlu0 %996, %v931
      %v998 = vpop.permute.xlu0 %997
      %1001 = vset.pattern.permute.xlu0 1
      %1002 = vperm.xlu0 %1001, %v932
      %v1003 = vpop.permute.xlu0 %1002
      %1006 = vset.pattern.permute.xlu0 1
      %1007 = vperm.xlu0 %1006, %v933
      %v1008 = vpop.permute.xlu0 %1007
      %1011 = vset.pattern.permute.xlu0 1
      %1012 = vperm.xlu0 %1011, %v934
      %v1013 = vpop.permute.xlu0 %1012
      %1016 = vset.pattern.permute.xlu0 1
      %1017 = vperm.xlu0 %1016, %v935
      %v1018 = vpop.permute.xlu0 %1017
      %1021 = vset.pattern.permute.xlu0 1
      %1022 = vperm.xlu0 %1021, %v936
      %v1023 = vpop.permute.xlu0 %1022
      %1026 = vset.pattern.permute.xlu0 1
      %1027 = vperm.xlu0 %1026, %v937
      %v1028 = vpop.permute.xlu0 %1027
      %1031 = vset.pattern.permute.xlu0 1
      %1032 = vperm.xlu0 %1031, %v938
      %v1033 = vpop.permute.xlu0 %1032
      %1036 = vset.pattern.permute.xlu0 1
      %1037 = vperm.xlu0 %1036, %v939
      %v1038 = vpop.permute.xlu0 %1037
      %1041 = vset.pattern.permute.xlu0 1
      %1042 = vperm.xlu0 %1041, %v940
      %v1043 = vpop.permute.xlu0 %1042
      %1046 = vset.pattern.permute.xlu0 1
      %1047 = vperm.xlu0 %1046, %v941
      %v1048 = vpop.permute.xlu0 %1047
      %1051 = vset.pattern.permute.xlu0 1
      %1052 = vperm.xlu0 %1051, %v942
      %v1053 = vpop.permute.xlu0 %1052
      %1056 = vset.pattern.permute.xlu0 1
      %1057 = vperm.xlu0 %1056, %v943
      %v1058 = vpop.permute.xlu0 %1057
      %1061 = vset.pattern.permute.xlu0 1
      %1062 = vperm.xlu0 %1061, %v944
      %v1063 = vpop.permute.xlu0 %1062
      %1066 = vset.pattern.permute.xlu0 1
      %1067 = vperm.xlu0 %1066, %v945
      %v1068 = vpop.permute.xlu0 %1067
      %1071 = vset.pattern.permute.xlu0 1
      %1072 = vperm.xlu0 %1071, %v946
      %v1073 = vpop.permute.xlu0 %1072
      %1076 = vset.pattern.permute.xlu0 1
      %1077 = vperm.xlu0 %1076, %v947
      %v1078 = vpop.permute.xlu0 %1077
      %1081 = vset.pattern.permute.xlu0 1
      %1082 = vperm.xlu0 %1081, %v948
      %v1083 = vpop.permute.xlu0 %1082
      %1086 = vset.pattern.permute.xlu0 1
      %1087 = vperm.xlu0 %1086, %v949
      %v1088 = vpop.permute.xlu0 %1087
      %1091 = vset.pattern.permute.xlu0 1
      %1092 = vperm.xlu0 %1091, %v950
      %v1093 = vpop.permute.xlu0 %1092
      %1096 = vset.pattern.permute.xlu0 1
      %1097 = vperm.xlu0 %1096, %v951
      %v1098 = vpop.permute.xlu0 %1097
      %1101 = vset.pattern.permute.xlu0 1
      %1102 = vperm.xlu0 %1101, %v952
      %v1103 = vpop.permute.xlu0 %1102
      %1106 = vset.pattern.permute.xlu0 1
      %1107 = vperm.xlu0 %1106, %v953
      %v1108 = vpop.permute.xlu0 %1107
      %1111 = vset.pattern.permute.xlu0 1
      %1112 = vperm.xlu0 %1111, %v954
      %v1113 = vpop.permute.xlu0 %1112
      %v1115 = vsub.f32 %v496, %v958
      %v1116 = vsub.f32 %v496, %v963
      %v1117 = vsub.f32 %v496, %v968
      %v1118 = vsub.f32 %v496, %v973
      %v1119 = vsub.f32 %v496, %v978
      %v1120 = vsub.f32 %v496, %v983
      %v1121 = vsub.f32 %v496, %v988
      %v1122 = vsub.f32 %v496, %v993
      %v1123 = vsub.f32 %v496, %v998
      %v1124 = vsub.f32 %v496, %v1003
      %v1125 = vsub.f32 %v496, %v1008
      %v1126 = vsub.f32 %v496, %v1013
      %v1127 = vsub.f32 %v496, %v1018
      %v1128 = vsub.f32 %v496, %v1023
      %v1129 = vsub.f32 %v496, %v1028
      %v1130 = vsub.f32 %v496, %v1033
      %v1131 = vsub.f32 %v496, %v1038
      %v1132 = vsub.f32 %v496, %v1043
      %v1133 = vsub.f32 %v496, %v1048
      %v1134 = vsub.f32 %v496, %v1053
      %v1135 = vsub.f32 %v496, %v1058
      %v1136 = vsub.f32 %v496, %v1063
      %v1137 = vsub.f32 %v496, %v1068
      %v1138 = vsub.f32 %v496, %v1073
      %v1139 = vsub.f32 %v496, %v1078
      %v1140 = vsub.f32 %v496, %v1083
      %v1141 = vsub.f32 %v496, %v1088
      %v1142 = vsub.f32 %v496, %v1093
      %v1143 = vsub.f32 %v496, %v1098
      %v1144 = vsub.f32 %v496, %v1103
      %v1145 = vsub.f32 %v496, %v1108
      %v1146 = vsub.f32 %v496, %v1113
      %v1147 = vand.u32 2147483647, %v1115
      %v1148 = vand.u32 2147483647, %v1116
      %v1149 = vand.u32 2147483647, %v1117
      %v1150 = vand.u32 2147483647, %v1118
      %v1151 = vand.u32 2147483647, %v1119
      %v1152 = vand.u32 2147483647, %v1120
      %v1153 = vand.u32 2147483647, %v1121
      %v1154 = vand.u32 2147483647, %v1122
      %v1155 = vand.u32 2147483647, %v1123
      %v1156 = vand.u32 2147483647, %v1124
      %v1157 = vand.u32 2147483647, %v1125
      %v1158 = vand.u32 2147483647, %v1126
      %v1159 = vand.u32 2147483647, %v1127
      %v1160 = vand.u32 2147483647, %v1128
      %v1161 = vand.u32 2147483647, %v1129
      %v1162 = vand.u32 2147483647, %v1130
      %v1163 = vand.u32 2147483647, %v1131
      %v1164 = vand.u32 2147483647, %v1132
      %v1165 = vand.u32 2147483647, %v1133
      %v1166 = vand.u32 2147483647, %v1134
      %v1167 = vand.u32 2147483647, %v1135
      %v1168 = vand.u32 2147483647, %v1136
      %v1169 = vand.u32 2147483647, %v1137
      %v1170 = vand.u32 2147483647, %v1138
      %v1171 = vand.u32 2147483647, %v1139
      %v1172 = vand.u32 2147483647, %v1140
      %v1173 = vand.u32 2147483647, %v1141
      %v1174 = vand.u32 2147483647, %v1142
      %v1175 = vand.u32 2147483647, %v1143
      %v1176 = vand.u32 2147483647, %v1144
      %v1177 = vand.u32 2147483647, %v1145
      %v1178 = vand.u32 2147483647, %v1146
      %v1179 = vsub.f32 1.0, %v1147
      %v1180 = vsub.f32 1.0, %v1148
      %v1181 = vsub.f32 1.0, %v1149
      %v1182 = vsub.f32 1.0, %v1150
      %v1183 = vsub.f32 1.0, %v1151
      %v1184 = vsub.f32 1.0, %v1152
      %v1185 = vsub.f32 1.0, %v1153
      %v1186 = vsub.f32 1.0, %v1154
      %v1187 = vsub.f32 1.0, %v1155
      %v1188 = vsub.f32 1.0, %v1156
      %v1189 = vsub.f32 1.0, %v1157
      %v1190 = vsub.f32 1.0, %v1158
      %v1191 = vsub.f32 1.0, %v1159
      %v1192 = vsub.f32 1.0, %v1160
      %v1193 = vsub.f32 1.0, %v1161
      %v1194 = vsub.f32 1.0, %v1162
      %v1195 = vsub.f32 1.0, %v1163
      %v1196 = vsub.f32 1.0, %v1164
      %v1197 = vsub.f32 1.0, %v1165
      %v1198 = vsub.f32 1.0, %v1166
      %v1199 = vsub.f32 1.0, %v1167
      %v1200 = vsub.f32 1.0, %v1168
      %v1201 = vsub.f32 1.0, %v1169
      %v1202 = vsub.f32 1.0, %v1170
      %v1203 = vsub.f32 1.0, %v1171
      %v1204 = vsub.f32 1.0, %v1172
      %v1205 = vsub.f32 1.0, %v1173
      %v1206 = vsub.f32 1.0, %v1174
      %v1207 = vsub.f32 1.0, %v1175
      %v1208 = vsub.f32 1.0, %v1176
      %v1209 = vsub.f32 1.0, %v1177
      %v1210 = vsub.f32 1.0, %v1178
      %v1211 = vmax.f32 %v1179, 0.0
      %v1212 = vmax.f32 %v1180, 0.0
      %v1213 = vmax.f32 %v1181, 0.0
      %v1214 = vmax.f32 %v1182, 0.0
      %v1215 = vmax.f32 %v1183, 0.0
      %v1216 = vmax.f32 %v1184, 0.0
      %v1217 = vmax.f32 %v1185, 0.0
      %v1218 = vmax.f32 %v1186, 0.0
      %v1219 = vmax.f32 %v1187, 0.0
      %v1220 = vmax.f32 %v1188, 0.0
      %v1221 = vmax.f32 %v1189, 0.0
      %v1222 = vmax.f32 %v1190, 0.0
      %v1223 = vmax.f32 %v1191, 0.0
      %v1224 = vmax.f32 %v1192, 0.0
      %v1225 = vmax.f32 %v1193, 0.0
      %v1226 = vmax.f32 %v1194, 0.0
      %v1227 = vmax.f32 %v1195, 0.0
      %v1228 = vmax.f32 %v1196, 0.0
      %v1229 = vmax.f32 %v1197, 0.0
      %v1230 = vmax.f32 %v1198, 0.0
      %v1231 = vmax.f32 %v1199, 0.0
      %v1232 = vmax.f32 %v1200, 0.0
      %v1233 = vmax.f32 %v1201, 0.0
      %v1234 = vmax.f32 %v1202, 0.0
      %v1235 = vmax.f32 %v1203, 0.0
      %v1236 = vmax.f32 %v1204, 0.0
      %v1237 = vmax.f32 %v1205, 0.0
      %v1238 = vmax.f32 %v1206, 0.0
      %v1239 = vmax.f32 %v1207, 0.0
      %v1240 = vmax.f32 %v1208, 0.0
      %v1241 = vmax.f32 %v1209, 0.0
      %v1242 = vmax.f32 %v1210, 0.0
      %v1243 = vpack.c.bf16 %v1212, %v1211
      %v1244 = vpack.c.bf16 %v1214, %v1213
      %v1245 = vpack.c.bf16 %v1216, %v1215
      %v1246 = vpack.c.bf16 %v1218, %v1217
      %v1247 = vpack.c.bf16 %v1220, %v1219
      %v1248 = vpack.c.bf16 %v1222, %v1221
      %v1249 = vpack.c.bf16 %v1224, %v1223
      %v1250 = vpack.c.bf16 %v1226, %v1225
      %v1251 = vpack.c.bf16 %v1228, %v1227
      %v1252 = vpack.c.bf16 %v1230, %v1229
      %v1253 = vpack.c.bf16 %v1232, %v1231
      %v1254 = vpack.c.bf16 %v1234, %v1233
      %v1255 = vpack.c.bf16 %v1236, %v1235
      %v1256 = vpack.c.bf16 %v1238, %v1237
      %v1257 = vpack.c.bf16 %v1240, %v1239
      %v1258 = vpack.c.bf16 %v1242, %v1241
      %1260 = vset.pattern.permute.xlu0 0
      %1261 = vperm.xlu0 %1260, %v731
      %v1262 = vpop.permute.xlu0 %1261
      %1265 = vset.pattern.permute.xlu0 0
      %1266 = vperm.xlu0 %1265, %v732
      %v1267 = vpop.permute.xlu0 %1266
      %1270 = vset.pattern.permute.xlu0 0
      %1271 = vperm.xlu0 %1270, %v733
      %v1272 = vpop.permute.xlu0 %1271
      %1275 = vset.pattern.permute.xlu0 0
      %1276 = vperm.xlu0 %1275, %v734
      %v1277 = vpop.permute.xlu0 %1276
      %1280 = vset.pattern.permute.xlu0 0
      %1281 = vperm.xlu0 %1280, %v735
      %v1282 = vpop.permute.xlu0 %1281
      %1285 = vset.pattern.permute.xlu0 0
      %1286 = vperm.xlu0 %1285, %v736
      %v1287 = vpop.permute.xlu0 %1286
      %1290 = vset.pattern.permute.xlu0 0
      %1291 = vperm.xlu0 %1290, %v737
      %v1292 = vpop.permute.xlu0 %1291
      %1295 = vset.pattern.permute.xlu0 0
      %1296 = vperm.xlu0 %1295, %v738
      %v1297 = vpop.permute.xlu0 %1296
      %1300 = vset.pattern.permute.xlu0 0
      %1301 = vperm.xlu0 %1300, %v739
      %v1302 = vpop.permute.xlu0 %1301
      %1305 = vset.pattern.permute.xlu0 0
      %1306 = vperm.xlu0 %1305, %v740
      %v1307 = vpop.permute.xlu0 %1306
      %1310 = vset.pattern.permute.xlu0 0
      %1311 = vperm.xlu0 %1310, %v741
      %v1312 = vpop.permute.xlu0 %1311
      %1315 = vset.pattern.permute.xlu0 0
      %1316 = vperm.xlu0 %1315, %v742
      %v1317 = vpop.permute.xlu0 %1316
      %1320 = vset.pattern.permute.xlu0 0
      %1321 = vperm.xlu0 %1320, %v743
      %v1322 = vpop.permute.xlu0 %1321
      %1325 = vset.pattern.permute.xlu0 0
      %1326 = vperm.xlu0 %1325, %v744
      %v1327 = vpop.permute.xlu0 %1326
      %1330 = vset.pattern.permute.xlu0 0
      %1331 = vperm.xlu0 %1330, %v745
      %v1332 = vpop.permute.xlu0 %1331
      %1335 = vset.pattern.permute.xlu0 0
      %1336 = vperm.xlu0 %1335, %v746
      %v1337 = vpop.permute.xlu0 %1336
      %1340 = vset.pattern.permute.xlu0 0
      %1341 = vperm.xlu0 %1340, %v747
      %v1342 = vpop.permute.xlu0 %1341
      %1345 = vset.pattern.permute.xlu0 0
      %1346 = vperm.xlu0 %1345, %v748
      %v1347 = vpop.permute.xlu0 %1346
      %1350 = vset.pattern.permute.xlu0 0
      %1351 = vperm.xlu0 %1350, %v749
      %v1352 = vpop.permute.xlu0 %1351
      %1355 = vset.pattern.permute.xlu0 0
      %1356 = vperm.xlu0 %1355, %v750
      %v1357 = vpop.permute.xlu0 %1356
      %1360 = vset.pattern.permute.xlu0 0
      %1361 = vperm.xlu0 %1360, %v751
      %v1362 = vpop.permute.xlu0 %1361
      %1365 = vset.pattern.permute.xlu0 0
      %1366 = vperm.xlu0 %1365, %v752
      %v1367 = vpop.permute.xlu0 %1366
      %1370 = vset.pattern.permute.xlu0 0
      %1371 = vperm.xlu0 %1370, %v753
      %v1372 = vpop.permute.xlu0 %1371
      %1375 = vset.pattern.permute.xlu0 0
      %1376 = vperm.xlu0 %1375, %v754
      %v1377 = vpop.permute.xlu0 %1376
      %1380 = vset.pattern.permute.xlu0 0
      %1381 = vperm.xlu0 %1380, %v755
      %v1382 = vpop.permute.xlu0 %1381
      %1385 = vset.pattern.permute.xlu0 0
      %1386 = vperm.xlu0 %1385, %v756
      %v1387 = vpop.permute.xlu0 %1386
      %1390 = vset.pattern.permute.xlu0 0
      %1391 = vperm.xlu0 %1390, %v757
      %v1392 = vpop.permute.xlu0 %1391
      %1395 = vset.pattern.permute.xlu0 0
      %1396 = vperm.xlu0 %1395, %v758
      %v1397 = vpop.permute.xlu0 %1396
      %1400 = vset.pattern.permute.xlu0 0
      %1401 = vperm.xlu0 %1400, %v759
      %v1402 = vpop.permute.xlu0 %1401
      %1405 = vset.pattern.permute.xlu0 0
      %1406 = vperm.xlu0 %1405, %v760
      %v1407 = vpop.permute.xlu0 %1406
      %1410 = vset.pattern.permute.xlu0 0
      %1411 = vperm.xlu0 %1410, %v761
      %v1412 = vpop.permute.xlu0 %1411
      %1415 = vset.pattern.permute.xlu0 0
      %1416 = vperm.xlu0 %1415, %v762
      %v1417 = vpop.permute.xlu0 %1416
      %v1419 = vsub.f32 %v496, %v1262
      %v1420 = vsub.f32 %v496, %v1267
      %v1421 = vsub.f32 %v496, %v1272
      %v1422 = vsub.f32 %v496, %v1277
      %v1423 = vsub.f32 %v496, %v1282
      %v1424 = vsub.f32 %v496, %v1287
      %v1425 = vsub.f32 %v496, %v1292
      %v1426 = vsub.f32 %v496, %v1297
      %v1427 = vsub.f32 %v496, %v1302
      %v1428 = vsub.f32 %v496, %v1307
      %v1429 = vsub.f32 %v496, %v1312
      %v1430 = vsub.f32 %v496, %v1317
      %v1431 = vsub.f32 %v496, %v1322
      %v1432 = vsub.f32 %v496, %v1327
      %v1433 = vsub.f32 %v496, %v1332
      %v1434 = vsub.f32 %v496, %v1337
      %v1435 = vsub.f32 %v496, %v1342
      %v1436 = vsub.f32 %v496, %v1347
      %v1437 = vsub.f32 %v496, %v1352
      %v1438 = vsub.f32 %v496, %v1357
      %v1439 = vsub.f32 %v496, %v1362
      %v1440 = vsub.f32 %v496, %v1367
      %v1441 = vsub.f32 %v496, %v1372
      %v1442 = vsub.f32 %v496, %v1377
      %v1443 = vsub.f32 %v496, %v1382
      %v1444 = vsub.f32 %v496, %v1387
      %v1445 = vsub.f32 %v496, %v1392
      %v1446 = vsub.f32 %v496, %v1397
      %v1447 = vsub.f32 %v496, %v1402
      %v1448 = vsub.f32 %v496, %v1407
      %v1449 = vsub.f32 %v496, %v1412
      %v1450 = vsub.f32 %v496, %v1417
      %v1451 = vand.u32 2147483647, %v1419
      %v1452 = vand.u32 2147483647, %v1420
      %v1453 = vand.u32 2147483647, %v1421
      %v1454 = vand.u32 2147483647, %v1422
      %v1455 = vand.u32 2147483647, %v1423
      %v1456 = vand.u32 2147483647, %v1424
      %v1457 = vand.u32 2147483647, %v1425
      %v1458 = vand.u32 2147483647, %v1426
      %v1459 = vand.u32 2147483647, %v1427
      %v1460 = vand.u32 2147483647, %v1428
      %v1461 = vand.u32 2147483647, %v1429
      %v1462 = vand.u32 2147483647, %v1430
      %v1463 = vand.u32 2147483647, %v1431
      %v1464 = vand.u32 2147483647, %v1432
      %v1465 = vand.u32 2147483647, %v1433
      %v1466 = vand.u32 2147483647, %v1434
      %v1467 = vand.u32 2147483647, %v1435
      %v1468 = vand.u32 2147483647, %v1436
      %v1469 = vand.u32 2147483647, %v1437
      %v1470 = vand.u32 2147483647, %v1438
      %v1471 = vand.u32 2147483647, %v1439
      %v1472 = vand.u32 2147483647, %v1440
      %v1473 = vand.u32 2147483647, %v1441
      %v1474 = vand.u32 2147483647, %v1442
      %v1475 = vand.u32 2147483647, %v1443
      %v1476 = vand.u32 2147483647, %v1444
      %v1477 = vand.u32 2147483647, %v1445
      %v1478 = vand.u32 2147483647, %v1446
      %v1479 = vand.u32 2147483647, %v1447
      %v1480 = vand.u32 2147483647, %v1448
      %v1481 = vand.u32 2147483647, %v1449
      %v1482 = vand.u32 2147483647, %v1450
      %v1483 = vsub.f32 1.0, %v1451
      %v1484 = vsub.f32 1.0, %v1452
      %v1485 = vsub.f32 1.0, %v1453
      %v1486 = vsub.f32 1.0, %v1454
      %v1487 = vsub.f32 1.0, %v1455
      %v1488 = vsub.f32 1.0, %v1456
      %v1489 = vsub.f32 1.0, %v1457
      %v1490 = vsub.f32 1.0, %v1458
      %v1491 = vsub.f32 1.0, %v1459
      %v1492 = vsub.f32 1.0, %v1460
      %v1493 = vsub.f32 1.0, %v1461
      %v1494 = vsub.f32 1.0, %v1462
      %v1495 = vsub.f32 1.0, %v1463
      %v1496 = vsub.f32 1.0, %v1464
      %v1497 = vsub.f32 1.0, %v1465
      %v1498 = vsub.f32 1.0, %v1466
      %v1499 = vsub.f32 1.0, %v1467
      %v1500 = vsub.f32 1.0, %v1468
      %v1501 = vsub.f32 1.0, %v1469
      %v1502 = vsub.f32 1.0, %v1470
      %v1503 = vsub.f32 1.0, %v1471
      %v1504 = vsub.f32 1.0, %v1472
      %v1505 = vsub.f32 1.0, %v1473
      %v1506 = vsub.f32 1.0, %v1474
      %v1507 = vsub.f32 1.0, %v1475
      %v1508 = vsub.f32 1.0, %v1476
      %v1509 = vsub.f32 1.0, %v1477
      %v1510 = vsub.f32 1.0, %v1478
      %v1511 = vsub.f32 1.0, %v1479
      %v1512 = vsub.f32 1.0, %v1480
      %v1513 = vsub.f32 1.0, %v1481
      %v1514 = vsub.f32 1.0, %v1482
      %v1515 = vmax.f32 %v1483, 0.0
      %v1516 = vmax.f32 %v1484, 0.0
      %v1517 = vmax.f32 %v1485, 0.0
      %v1518 = vmax.f32 %v1486, 0.0
      %v1519 = vmax.f32 %v1487, 0.0
      %v1520 = vmax.f32 %v1488, 0.0
      %v1521 = vmax.f32 %v1489, 0.0
      %v1522 = vmax.f32 %v1490, 0.0
      %v1523 = vmax.f32 %v1491, 0.0
      %v1524 = vmax.f32 %v1492, 0.0
      %v1525 = vmax.f32 %v1493, 0.0
      %v1526 = vmax.f32 %v1494, 0.0
      %v1527 = vmax.f32 %v1495, 0.0
      %v1528 = vmax.f32 %v1496, 0.0
      %v1529 = vmax.f32 %v1497, 0.0
      %v1530 = vmax.f32 %v1498, 0.0
      %v1531 = vmax.f32 %v1499, 0.0
      %v1532 = vmax.f32 %v1500, 0.0
      %v1533 = vmax.f32 %v1501, 0.0
      %v1534 = vmax.f32 %v1502, 0.0
      %v1535 = vmax.f32 %v1503, 0.0
      %v1536 = vmax.f32 %v1504, 0.0
      %v1537 = vmax.f32 %v1505, 0.0
      %v1538 = vmax.f32 %v1506, 0.0
      %v1539 = vmax.f32 %v1507, 0.0
      %v1540 = vmax.f32 %v1508, 0.0
      %v1541 = vmax.f32 %v1509, 0.0
      %v1542 = vmax.f32 %v1510, 0.0
      %v1543 = vmax.f32 %v1511, 0.0
      %v1544 = vmax.f32 %v1512, 0.0
      %v1545 = vmax.f32 %v1513, 0.0
      %v1546 = vmax.f32 %v1514, 0.0
      %s1547 = smul.u32 %s498, 4
      %s1548 = smul.addr %s1547, 4
      %s1549 = scalar_lea.vmem %s3, %s1548
      %v1550 = vld [vmem:[%s1549] sm:$0xff]
      %v1551 = vld [vmem:[%s1549 + $0x8] sm:$0xff]
      %v1554 = vunpack.c.l.b16 %v1550
      %v1555 = vunpack.c.h.b16 %v1550
      %v1556 = vunpack.c.l.b16 %v1551
      %v1557 = vunpack.c.h.b16 %v1551
      %v1558 = vpack.c.b16 %v1556, %v1554
      %v1559 = vpack.c.b16 %v1557, %v1555
      %vm1562 = vcmask 130048
      %v1564 = vsel %vm1562, %v1243, 0
      %v1567 = vsel %vm1562, %v1244, 0
      %v1570 = vsel %vm1562, %v1245, 0
      %v1573 = vsel %vm1562, %v1246, 0
      %v1576 = vsel %vm1562, %v1247, 0
      %v1579 = vsel %vm1562, %v1248, 0
      %v1582 = vsel %vm1562, %v1249, 0
      %v1585 = vsel %vm1562, %v1250, 0
      %v1588 = vsel %vm1562, %v1251, 0
      %v1591 = vsel %vm1562, %v1252, 0
      %v1594 = vsel %vm1562, %v1253, 0
      %v1597 = vsel %vm1562, %v1254, 0
      %v1600 = vsel %vm1562, %v1255, 0
      %v1603 = vsel %vm1562, %v1256, 0
      %v1606 = vsel %vm1562, %v1257, 0
      %v1609 = vsel %vm1562, %v1258, 0
      %1611 = vmatprep.subr.bf16.mxu0 %v1559
      %1612 = vmatpush1.bf16.msra.mxu0 %v1558
      %1613 = vmatprep.subr.bf16.mxu0 0
      %1614 = vmatpush1.bf16.msra.mxu0 0
      %1615 = vmatprep.subr.bf16.mxu0 0
      %1616 = vmatpush1.bf16.msra.mxu0 0
      %1617 = vmatprep.subr.bf16.mxu0 0
      %1618 = vmatpush1.bf16.msra.mxu0 0
      %1619 = vmatprep.subr.bf16.mxu0 0
      %1620 = vmatpush1.bf16.msra.mxu0 0
      %1621 = vmatprep.subr.bf16.mxu0 0
      %1622 = vmatpush1.bf16.msra.mxu0 0
      %1623 = vmatprep.subr.bf16.mxu0 0
      %1624 = vmatpush1.bf16.msra.mxu0 0
      %1625 = vmatprep.subr.bf16.mxu0 0
      %1626 = vmatpush1.bf16.msra.mxu0 0
      %1627 = vmatprep.subr.bf16.mxu0 0
      %1628 = vmatpush1.bf16.msra.mxu0 0
      %1629 = vmatprep.subr.bf16.mxu0 0
      %1630 = vmatpush1.bf16.msra.mxu0 0
      %1631 = vmatprep.subr.bf16.mxu0 0
      %1632 = vmatpush1.bf16.msra.mxu0 0
      %1633 = vmatprep.subr.bf16.mxu0 0
      %1634 = vmatpush1.bf16.msra.mxu0 0
      %1635 = vmatprep.subr.bf16.mxu0 0
      %1636 = vmatpush1.bf16.msra.mxu0 0
      %1637 = vmatprep.subr.bf16.mxu0 0
      %1638 = vmatpush1.bf16.msra.mxu0 0
      %1639 = vmatprep.subr.bf16.mxu0 0
      %1640 = vmatpush1.bf16.msra.mxu0 0
      %1641 = vmatprep.subr.bf16.mxu0 0
      %1642 = vmatpush1.bf16.msra.mxu0 0
      %1643 = vmatprep.mubr.bf16.mxu0 0
      %1644 = vmatmul.mubr.bf16.gmra.mrb[0].mxu0 %v1564
      %v1645 = vpop.f32.mrb[0].mxu0
      %v1646 = vadd.f32 0.0, %v1645
      %v1647 = vpop.f32.mrb[0].mxu0
      %v1648 = vadd.f32 0.0, %v1647
      %v1649 = vpop.f32.mrb[0].mxu0
      %v1650 = vadd.f32 0.0, %v1649
      %v1651 = vpop.f32.mrb[0].mxu0
      %v1652 = vadd.f32 0.0, %v1651
      %1653 = vmatprep.mubr.bf16.mxu0 0
      %1654 = vmatmul.mubr.bf16.gmra.mrb[0].mxu0 %v1567
      %v1655 = vpop.f32.mrb[0].mxu0
      %v1656 = vadd.f32 0.0, %v1655
      %v1657 = vpop.f32.mrb[0].mxu0
      %v1658 = vadd.f32 0.0, %v1657
      %v1659 = vpop.f32.mrb[0].mxu0
      %v1660 = vadd.f32 0.0, %v1659
      %v1661 = vpop.f32.mrb[0].mxu0
      %v1662 = vadd.f32 0.0, %v1661
      %1663 = vmatprep.mubr.bf16.mxu0 0
      %1664 = vmatmul.mubr.bf16.gmra.mrb[0].mxu0 %v1570
      %v1665 = vpop.f32.mrb[0].mxu0
      %v1666 = vadd.f32 0.0, %v1665
      %v1667 = vpop.f32.mrb[0].mxu0
      %v1668 = vadd.f32 0.0, %v1667
      %v1669 = vpop.f32.mrb[0].mxu0
      %v1670 = vadd.f32 0.0, %v1669
      %v1671 = vpop.f32.mrb[0].mxu0
      %v1672 = vadd.f32 0.0, %v1671
      %1673 = vmatprep.mubr.bf16.mxu0 0
      %1674 = vmatmul.mubr.bf16.gmra.mrb[0].mxu0 %v1573
      %v1675 = vpop.f32.mrb[0].mxu0
      %v1676 = vadd.f32 0.0, %v1675
      %v1677 = vpop.f32.mrb[0].mxu0
      %v1678 = vadd.f32 0.0, %v1677
      %v1679 = vpop.f32.mrb[0].mxu0
      %v1680 = vadd.f32 0.0, %v1679
      %v1681 = vpop.f32.mrb[0].mxu0
      %v1682 = vadd.f32 0.0, %v1681
      %1683 = vmatprep.mubr.bf16.mxu0 0
      %1684 = vmatmul.mubr.bf16.gmra.mrb[0].mxu0 %v1576
      %v1685 = vpop.f32.mrb[0].mxu0
      %v1686 = vadd.f32 0.0, %v1685
      %v1687 = vpop.f32.mrb[0].mxu0
      %v1688 = vadd.f32 0.0, %v1687
      %v1689 = vpop.f32.mrb[0].mxu0
      %v1690 = vadd.f32 0.0, %v1689
      %v1691 = vpop.f32.mrb[0].mxu0
      %v1692 = vadd.f32 0.0, %v1691
      %1693 = vmatprep.mubr.bf16.mxu0 0
      %1694 = vmatmul.mubr.bf16.gmra.mrb[0].mxu0 %v1579
      %v1695 = vpop.f32.mrb[0].mxu0
      %v1696 = vadd.f32 0.0, %v1695
      %v1697 = vpop.f32.mrb[0].mxu0
      %v1698 = vadd.f32 0.0, %v1697
      %v1699 = vpop.f32.mrb[0].mxu0
      %v1700 = vadd.f32 0.0, %v1699
      %v1701 = vpop.f32.mrb[0].mxu0
      %v1702 = vadd.f32 0.0, %v1701
      %1703 = vmatprep.mubr.bf16.mxu0 0
      %1704 = vmatmul.mubr.bf16.gmra.mrb[0].mxu0 %v1582
      %v1705 = vpop.f32.mrb[0].mxu0
      %v1706 = vadd.f32 0.0, %v1705
      %v1707 = vpop.f32.mrb[0].mxu0
      %v1708 = vadd.f32 0.0, %v1707
      %v1709 = vpop.f32.mrb[0].mxu0
      %v1710 = vadd.f32 0.0, %v1709
      %v1711 = vpop.f32.mrb[0].mxu0
      %v1712 = vadd.f32 0.0, %v1711
      %1713 = vmatprep.mubr.bf16.mxu0 0
      %1714 = vmatmul.mubr.bf16.gmra.mrb[0].mxu0 %v1585
      %v1715 = vpop.f32.mrb[0].mxu0
      %v1716 = vadd.f32 0.0, %v1715
      %v1717 = vpop.f32.mrb[0].mxu0
      %v1718 = vadd.f32 0.0, %v1717
      %v1719 = vpop.f32.mrb[0].mxu0
      %v1720 = vadd.f32 0.0, %v1719
      %v1721 = vpop.f32.mrb[0].mxu0
      %v1722 = vadd.f32 0.0, %v1721
      %1723 = vmatprep.mubr.bf16.mxu0 0
      %1724 = vmatmul.mubr.bf16.gmra.mrb[0].mxu0 %v1588
      %v1725 = vpop.f32.mrb[0].mxu0
      %v1726 = vadd.f32 0.0, %v1725
      %v1727 = vpop.f32.mrb[0].mxu0
      %v1728 = vadd.f32 0.0, %v1727
      %v1729 = vpop.f32.mrb[0].mxu0
      %v1730 = vadd.f32 0.0, %v1729
      %v1731 = vpop.f32.mrb[0].mxu0
      %v1732 = vadd.f32 0.0, %v1731
      %1733 = vmatprep.mubr.bf16.mxu0 0
      %1734 = vmatmul.mubr.bf16.gmra.mrb[0].mxu0 %v1591
      %v1735 = vpop.f32.mrb[0].mxu0
      %v1736 = vadd.f32 0.0, %v1735
      %v1737 = vpop.f32.mrb[0].mxu0
      %v1738 = vadd.f32 0.0, %v1737
      %v1739 = vpop.f32.mrb[0].mxu0
      %v1740 = vadd.f32 0.0, %v1739
      %v1741 = vpop.f32.mrb[0].mxu0
      %v1742 = vadd.f32 0.0, %v1741
      %1743 = vmatprep.mubr.bf16.mxu0 0
      %1744 = vmatmul.mubr.bf16.gmra.mrb[0].mxu0 %v1594
      %v1745 = vpop.f32.mrb[0].mxu0
      %v1746 = vadd.f32 0.0, %v1745
      %v1747 = vpop.f32.mrb[0].mxu0
      %v1748 = vadd.f32 0.0, %v1747
      %v1749 = vpop.f32.mrb[0].mxu0
      %v1750 = vadd.f32 0.0, %v1749
      %v1751 = vpop.f32.mrb[0].mxu0
      %v1752 = vadd.f32 0.0, %v1751
      %1753 = vmatprep.mubr.bf16.mxu0 0
      %1754 = vmatmul.mubr.bf16.gmra.mrb[0].mxu0 %v1597
      %v1755 = vpop.f32.mrb[0].mxu0
      %v1756 = vadd.f32 0.0, %v1755
      %v1757 = vpop.f32.mrb[0].mxu0
      %v1758 = vadd.f32 0.0, %v1757
      %v1759 = vpop.f32.mrb[0].mxu0
      %v1760 = vadd.f32 0.0, %v1759
      %v1761 = vpop.f32.mrb[0].mxu0
      %v1762 = vadd.f32 0.0, %v1761
      %1763 = vmatprep.mubr.bf16.mxu0 0
      %1764 = vmatmul.mubr.bf16.gmra.mrb[0].mxu0 %v1600
      %v1765 = vpop.f32.mrb[0].mxu0
      %v1766 = vadd.f32 0.0, %v1765
      %v1767 = vpop.f32.mrb[0].mxu0
      %v1768 = vadd.f32 0.0, %v1767
      %v1769 = vpop.f32.mrb[0].mxu0
      %v1770 = vadd.f32 0.0, %v1769
      %v1771 = vpop.f32.mrb[0].mxu0
      %v1772 = vadd.f32 0.0, %v1771
      %1773 = vmatprep.mubr.bf16.mxu0 0
      %1774 = vmatmul.mubr.bf16.gmra.mrb[0].mxu0 %v1603
      %v1775 = vpop.f32.mrb[0].mxu0
      %v1776 = vadd.f32 0.0, %v1775
      %v1777 = vpop.f32.mrb[0].mxu0
      %v1778 = vadd.f32 0.0, %v1777
      %v1779 = vpop.f32.mrb[0].mxu0
      %v1780 = vadd.f32 0.0, %v1779
      %v1781 = vpop.f32.mrb[0].mxu0
      %v1782 = vadd.f32 0.0, %v1781
      %1783 = vmatprep.mubr.bf16.mxu0 0
      %1784 = vmatmul.mubr.bf16.gmra.mrb[0].mxu0 %v1606
      %v1785 = vpop.f32.mrb[0].mxu0
      %v1786 = vadd.f32 0.0, %v1785
      %v1787 = vpop.f32.mrb[0].mxu0
      %v1788 = vadd.f32 0.0, %v1787
      %v1789 = vpop.f32.mrb[0].mxu0
      %v1790 = vadd.f32 0.0, %v1789
      %v1791 = vpop.f32.mrb[0].mxu0
      %v1792 = vadd.f32 0.0, %v1791
      %1793 = vmatprep.mubr.bf16.mxu0 0
      %1794 = vmatmul.mubr.bf16.gmra.mrb[0].mxu0 %v1609
      %v1795 = vpop.f32.mrb[0].mxu0
      %v1796 = vadd.f32 0.0, %v1795
      %v1797 = vpop.f32.mrb[0].mxu0
      %v1798 = vadd.f32 0.0, %v1797
      %v1799 = vpop.f32.mrb[0].mxu0
      %v1800 = vadd.f32 0.0, %v1799
      %v1801 = vpop.f32.mrb[0].mxu0
      %v1802 = vadd.f32 0.0, %v1801
      %1803 = vdwg.mxu0
      %v1804 = vmul.f32 %v1515, %v1646
      %v1805 = vmul.f32 %v1516, %v1650
      %v1806 = vmul.f32 %v1517, %v1656
      %v1807 = vmul.f32 %v1518, %v1660
      %v1808 = vmul.f32 %v1519, %v1666
      %v1809 = vmul.f32 %v1520, %v1670
      %v1810 = vmul.f32 %v1521, %v1676
      %v1811 = vmul.f32 %v1522, %v1680
      %v1812 = vmul.f32 %v1523, %v1686
      %v1813 = vmul.f32 %v1524, %v1690
      %v1814 = vmul.f32 %v1525, %v1696
      %v1815 = vmul.f32 %v1526, %v1700
      %v1816 = vmul.f32 %v1527, %v1706
      %v1817 = vmul.f32 %v1528, %v1710
      %v1818 = vmul.f32 %v1529, %v1716
      %v1819 = vmul.f32 %v1530, %v1720
      %v1820 = vmul.f32 %v1531, %v1726
      %v1821 = vmul.f32 %v1532, %v1730
      %v1822 = vmul.f32 %v1533, %v1736
      %v1823 = vmul.f32 %v1534, %v1740
      %v1824 = vmul.f32 %v1535, %v1746
      %v1825 = vmul.f32 %v1536, %v1750
      %v1826 = vmul.f32 %v1537, %v1756
      %v1827 = vmul.f32 %v1538, %v1760
      %v1828 = vmul.f32 %v1539, %v1766
      %v1829 = vmul.f32 %v1540, %v1770
      %v1830 = vmul.f32 %v1541, %v1776
      %v1831 = vmul.f32 %v1542, %v1780
      %v1832 = vmul.f32 %v1543, %v1786
      %v1833 = vmul.f32 %v1544, %v1790
      %v1834 = vmul.f32 %v1545, %v1796
      %v1835 = vmul.f32 %v1546, %v1800
      %1836 = vadd.xlane.f32.xlu0 %v1804
      %v1837 = vpop.xlane.xlu0 %1836
      %1838 = vadd.xlane.f32.xlu0 %v1805
      %v1839 = vpop.xlane.xlu0 %1838
      %1840 = vadd.xlane.f32.xlu0 %v1806
      %v1841 = vpop.xlane.xlu0 %1840
      %1842 = vadd.xlane.f32.xlu0 %v1807
      %v1843 = vpop.xlane.xlu0 %1842
      %1844 = vadd.xlane.f32.xlu0 %v1808
      %v1845 = vpop.xlane.xlu0 %1844
      %1846 = vadd.xlane.f32.xlu0 %v1809
      %v1847 = vpop.xlane.xlu0 %1846
      %1848 = vadd.xlane.f32.xlu0 %v1810
      %v1849 = vpop.xlane.xlu0 %1848
      %1850 = vadd.xlane.f32.xlu0 %v1811
      %v1851 = vpop.xlane.xlu0 %1850
      %1852 = vadd.xlane.f32.xlu0 %v1812
      %v1853 = vpop.xlane.xlu0 %1852
      %1854 = vadd.xlane.f32.xlu0 %v1813
      %v1855 = vpop.xlane.xlu0 %1854
      %1856 = vadd.xlane.f32.xlu0 %v1814
      %v1857 = vpop.xlane.xlu0 %1856
      %1858 = vadd.xlane.f32.xlu0 %v1815
      %v1859 = vpop.xlane.xlu0 %1858
      %1860 = vadd.xlane.f32.xlu0 %v1816
      %v1861 = vpop.xlane.xlu0 %1860
      %1862 = vadd.xlane.f32.xlu0 %v1817
      %v1863 = vpop.xlane.xlu0 %1862
      %1864 = vadd.xlane.f32.xlu0 %v1818
      %v1865 = vpop.xlane.xlu0 %1864
      %1866 = vadd.xlane.f32.xlu0 %v1819
      %v1867 = vpop.xlane.xlu0 %1866
      %1868 = vadd.xlane.f32.xlu0 %v1820
      %v1869 = vpop.xlane.xlu0 %1868
      %1870 = vadd.xlane.f32.xlu0 %v1821
      %v1871 = vpop.xlane.xlu0 %1870
      %1872 = vadd.xlane.f32.xlu0 %v1822
      %v1873 = vpop.xlane.xlu0 %1872
      %1874 = vadd.xlane.f32.xlu0 %v1823
      %v1875 = vpop.xlane.xlu0 %1874
      %1876 = vadd.xlane.f32.xlu0 %v1824
      %v1877 = vpop.xlane.xlu0 %1876
      %1878 = vadd.xlane.f32.xlu0 %v1825
      %v1879 = vpop.xlane.xlu0 %1878
      %1880 = vadd.xlane.f32.xlu0 %v1826
      %v1881 = vpop.xlane.xlu0 %1880
      %1882 = vadd.xlane.f32.xlu0 %v1827
      %v1883 = vpop.xlane.xlu0 %1882
      %1884 = vadd.xlane.f32.xlu0 %v1828
      %v1885 = vpop.xlane.xlu0 %1884
      %1886 = vadd.xlane.f32.xlu0 %v1829
      %v1887 = vpop.xlane.xlu0 %1886
      %1888 = vadd.xlane.f32.xlu0 %v1830
      %v1889 = vpop.xlane.xlu0 %1888
      %1890 = vadd.xlane.f32.xlu0 %v1831
      %v1891 = vpop.xlane.xlu0 %1890
      %1892 = vadd.xlane.f32.xlu0 %v1832
      %v1893 = vpop.xlane.xlu0 %1892
      %1894 = vadd.xlane.f32.xlu0 %v1833
      %v1895 = vpop.xlane.xlu0 %1894
      %1896 = vadd.xlane.f32.xlu0 %v1834
      %v1897 = vpop.xlane.xlu0 %1896
      %1898 = vadd.xlane.f32.xlu0 %v1835
      %v1899 = vpop.xlane.xlu0 %1898
      %v1900 = vadd.f32 %v503, %v1837
      %v1901 = vadd.f32 %v504, %v1839
      %v1902 = vadd.f32 %v505, %v1841
      %v1903 = vadd.f32 %v506, %v1843
      %v1904 = vadd.f32 %v507, %v1845
      %v1905 = vadd.f32 %v508, %v1847
      %v1906 = vadd.f32 %v509, %v1849
      %v1907 = vadd.f32 %v510, %v1851
      %v1908 = vadd.f32 %v511, %v1853
      %v1909 = vadd.f32 %v512, %v1855
      %v1910 = vadd.f32 %v513, %v1857
      %v1911 = vadd.f32 %v514, %v1859
      %v1912 = vadd.f32 %v515, %v1861
      %v1913 = vadd.f32 %v516, %v1863
      %v1914 = vadd.f32 %v517, %v1865
      %v1915 = vadd.f32 %v518, %v1867
      %v1916 = vadd.f32 %v519, %v1869
      %v1917 = vadd.f32 %v520, %v1871
      %v1918 = vadd.f32 %v521, %v1873
      %v1919 = vadd.f32 %v522, %v1875
      %v1920 = vadd.f32 %v523, %v1877
      %v1921 = vadd.f32 %v524, %v1879
      %v1922 = vadd.f32 %v525, %v1881
      %v1923 = vadd.f32 %v526, %v1883
      %v1924 = vadd.f32 %v527, %v1885
      %v1925 = vadd.f32 %v528, %v1887
      %v1926 = vadd.f32 %v529, %v1889
      %v1927 = vadd.f32 %v530, %v1891
      %v1928 = vadd.f32 %v531, %v1893
      %v1929 = vadd.f32 %v532, %v1895
      %v1930 = vadd.f32 %v533, %v1897
      %v1931 = vadd.f32 %v534, %v1899
      %v1932 = vmul.f32 %v1515, %v1648
      %v1933 = vmul.f32 %v1516, %v1652
      %v1934 = vmul.f32 %v1517, %v1658
      %v1935 = vmul.f32 %v1518, %v1662
      %v1936 = vmul.f32 %v1519, %v1668
      %v1937 = vmul.f32 %v1520, %v1672
      %v1938 = vmul.f32 %v1521, %v1678
      %v1939 = vmul.f32 %v1522, %v1682
      %v1940 = vmul.f32 %v1523, %v1688
      %v1941 = vmul.f32 %v1524, %v1692
      %v1942 = vmul.f32 %v1525, %v1698
      %v1943 = vmul.f32 %v1526, %v1702
      %v1944 = vmul.f32 %v1527, %v1708
      %v1945 = vmul.f32 %v1528, %v1712
      %v1946 = vmul.f32 %v1529, %v1718
      %v1947 = vmul.f32 %v1530, %v1722
      %v1948 = vmul.f32 %v1531, %v1728
      %v1949 = vmul.f32 %v1532, %v1732
      %v1950 = vmul.f32 %v1533, %v1738
      %v1951 = vmul.f32 %v1534, %v1742
      %v1952 = vmul.f32 %v1535, %v1748
      %v1953 = vmul.f32 %v1536, %v1752
      %v1954 = vmul.f32 %v1537, %v1758
      %v1955 = vmul.f32 %v1538, %v1762
      %v1956 = vmul.f32 %v1539, %v1768
      %v1957 = vmul.f32 %v1540, %v1772
      %v1958 = vmul.f32 %v1541, %v1778
      %v1959 = vmul.f32 %v1542, %v1782
      %v1960 = vmul.f32 %v1543, %v1788
      %v1961 = vmul.f32 %v1544, %v1792
      %v1962 = vmul.f32 %v1545, %v1798
      %v1963 = vmul.f32 %v1546, %v1802
      %1964 = vadd.xlane.f32.xlu0 %v1932
      %v1965 = vpop.xlane.xlu0 %1964
      %1966 = vadd.xlane.f32.xlu0 %v1933
      %v1967 = vpop.xlane.xlu0 %1966
      %1968 = vadd.xlane.f32.xlu0 %v1934
      %v1969 = vpop.xlane.xlu0 %1968
      %1970 = vadd.xlane.f32.xlu0 %v1935
      %v1971 = vpop.xlane.xlu0 %1970
      %1972 = vadd.xlane.f32.xlu0 %v1936
      %v1973 = vpop.xlane.xlu0 %1972
      %1974 = vadd.xlane.f32.xlu0 %v1937
      %v1975 = vpop.xlane.xlu0 %1974
      %1976 = vadd.xlane.f32.xlu0 %v1938
      %v1977 = vpop.xlane.xlu0 %1976
      %1978 = vadd.xlane.f32.xlu0 %v1939
      %v1979 = vpop.xlane.xlu0 %1978
      %1980 = vadd.xlane.f32.xlu0 %v1940
      %v1981 = vpop.xlane.xlu0 %1980
      %1982 = vadd.xlane.f32.xlu0 %v1941
      %v1983 = vpop.xlane.xlu0 %1982
      %1984 = vadd.xlane.f32.xlu0 %v1942
      %v1985 = vpop.xlane.xlu0 %1984
      %1986 = vadd.xlane.f32.xlu0 %v1943
      %v1987 = vpop.xlane.xlu0 %1986
      %1988 = vadd.xlane.f32.xlu0 %v1944
      %v1989 = vpop.xlane.xlu0 %1988
      %1990 = vadd.xlane.f32.xlu0 %v1945
      %v1991 = vpop.xlane.xlu0 %1990
      %1992 = vadd.xlane.f32.xlu0 %v1946
      %v1993 = vpop.xlane.xlu0 %1992
      %1994 = vadd.xlane.f32.xlu0 %v1947
      %v1995 = vpop.xlane.xlu0 %1994
      %1996 = vadd.xlane.f32.xlu0 %v1948
      %v1997 = vpop.xlane.xlu0 %1996
      %1998 = vadd.xlane.f32.xlu0 %v1949
      %v1999 = vpop.xlane.xlu0 %1998
      %2000 = vadd.xlane.f32.xlu0 %v1950
      %v2001 = vpop.xlane.xlu0 %2000
      %2002 = vadd.xlane.f32.xlu0 %v1951
      %v2003 = vpop.xlane.xlu0 %2002
      %2004 = vadd.xlane.f32.xlu0 %v1952
      %v2005 = vpop.xlane.xlu0 %2004
      %2006 = vadd.xlane.f32.xlu0 %v1953
      %v2007 = vpop.xlane.xlu0 %2006
      %2008 = vadd.xlane.f32.xlu0 %v1954
      %v2009 = vpop.xlane.xlu0 %2008
      %2010 = vadd.xlane.f32.xlu0 %v1955
      %v2011 = vpop.xlane.xlu0 %2010
      %2012 = vadd.xlane.f32.xlu0 %v1956
      %v2013 = vpop.xlane.xlu0 %2012
      %2014 = vadd.xlane.f32.xlu0 %v1957
      %v2015 = vpop.xlane.xlu0 %2014
      %2016 = vadd.xlane.f32.xlu0 %v1958
      %v2017 = vpop.xlane.xlu0 %2016
      %2018 = vadd.xlane.f32.xlu0 %v1959
      %v2019 = vpop.xlane.xlu0 %2018
      %2020 = vadd.xlane.f32.xlu0 %v1960
      %v2021 = vpop.xlane.xlu0 %2020
      %2022 = vadd.xlane.f32.xlu0 %v1961
      %v2023 = vpop.xlane.xlu0 %2022
      %2024 = vadd.xlane.f32.xlu0 %v1962
      %v2025 = vpop.xlane.xlu0 %2024
      %2026 = vadd.xlane.f32.xlu0 %v1963
      %v2027 = vpop.xlane.xlu0 %2026
      %v2028 = vadd.f32 %v535, %v1965
      %v2029 = vadd.f32 %v536, %v1967
      %v2030 = vadd.f32 %v537, %v1969
      %v2031 = vadd.f32 %v538, %v1971
      %v2032 = vadd.f32 %v539, %v1973
      %v2033 = vadd.f32 %v540, %v1975
      %v2034 = vadd.f32 %v541, %v1977
      %v2035 = vadd.f32 %v542, %v1979
      %v2036 = vadd.f32 %v543, %v1981
      %v2037 = vadd.f32 %v544, %v1983
      %v2038 = vadd.f32 %v545, %v1985
      %v2039 = vadd.f32 %v546, %v1987
      %v2040 = vadd.f32 %v547, %v1989
      %v2041 = vadd.f32 %v548, %v1991
      %v2042 = vadd.f32 %v549, %v1993
      %v2043 = vadd.f32 %v550, %v1995
      %v2044 = vadd.f32 %v551, %v1997
      %v2045 = vadd.f32 %v552, %v1999
      %v2046 = vadd.f32 %v553, %v2001
      %v2047 = vadd.f32 %v554, %v2003
      %v2048 = vadd.f32 %v555, %v2005
      %v2049 = vadd.f32 %v556, %v2007
      %v2050 = vadd.f32 %v557, %v2009
      %v2051 = vadd.f32 %v558, %v2011
      %v2052 = vadd.f32 %v559, %v2013
      %v2053 = vadd.f32 %v560, %v2015
      %v2054 = vadd.f32 %v561, %v2017
      %v2055 = vadd.f32 %v562, %v2019
      %v2056 = vadd.f32 %v563, %v2021
      %v2057 = vadd.f32 %v564, %v2023
      %v2058 = vadd.f32 %v565, %v2025
      %v2059 = vadd.f32 %v566, %v2027
    $region26: #{_cost_iwe_eval.1} parent=1 // loop_footer
      %s502 = sadd.s32 1, %s498
    $region27: #{_cost_iwe_eval.1} parent=1 // loop_footer_branch
      %497 = sbr.rel target = $region23
    $region28: #{_cost_iwe_eval.1} parent=1 // loop_exit
      _
    %vm2060 = vcmask 7168
    %2061 = vst.msk [vmem:[%s4] sm:$0xff] %vm2060, %v503
    %2062 = vst.msk [vmem:[%s4 + $0x8] sm:$0xff] %vm2060, %v504
    %2063 = vst.msk [vmem:[%s4 + $0x10] sm:$0xff] %vm2060, %v505
    %2064 = vst.msk [vmem:[%s4 + $0x18] sm:$0xff] %vm2060, %v506
    %2065 = vst.msk [vmem:[%s4 + $0x20] sm:$0xff] %vm2060, %v507
    %2066 = vst.msk [vmem:[%s4 + $0x28] sm:$0xff] %vm2060, %v508
    %2067 = vst.msk [vmem:[%s4 + $0x30] sm:$0xff] %vm2060, %v509
    %2068 = vst.msk [vmem:[%s4 + $0x38] sm:$0xff] %vm2060, %v510
    %2069 = vst.msk [vmem:[%s4 + $0x40] sm:$0xff] %vm2060, %v511
    %2070 = vst.msk [vmem:[%s4 + $0x48] sm:$0xff] %vm2060, %v512
    %2071 = vst.msk [vmem:[%s4 + $0x50] sm:$0xff] %vm2060, %v513
    %2072 = vst.msk [vmem:[%s4 + $0x58] sm:$0xff] %vm2060, %v514
    %2073 = vst.msk [vmem:[%s4 + $0x60] sm:$0xff] %vm2060, %v515
    %2074 = vst.msk [vmem:[%s4 + $0x68] sm:$0xff] %vm2060, %v516
    %2075 = vst.msk [vmem:[%s4 + $0x70] sm:$0xff] %vm2060, %v517
    %2076 = vst.msk [vmem:[%s4 + $0x78] sm:$0xff] %vm2060, %v518
    %2077 = vst.msk [vmem:[%s4 + $0x80] sm:$0xff] %vm2060, %v519
    %2078 = vst.msk [vmem:[%s4 + $0x88] sm:$0xff] %vm2060, %v520
    %2079 = vst.msk [vmem:[%s4 + $0x90] sm:$0xff] %vm2060, %v521
    %2080 = vst.msk [vmem:[%s4 + $0x98] sm:$0xff] %vm2060, %v522
    %2081 = vst.msk [vmem:[%s4 + $0xa0] sm:$0xff] %vm2060, %v523
    %2082 = vst.msk [vmem:[%s4 + $0xa8] sm:$0xff] %vm2060, %v524
    %2083 = vst.msk [vmem:[%s4 + $0xb0] sm:$0xff] %vm2060, %v525
    %2084 = vst.msk [vmem:[%s4 + $0xb8] sm:$0xff] %vm2060, %v526
    %2085 = vst.msk [vmem:[%s4 + $0xc0] sm:$0xff] %vm2060, %v527
    %2086 = vst.msk [vmem:[%s4 + $0xc8] sm:$0xff] %vm2060, %v528
    %2087 = vst.msk [vmem:[%s4 + $0xd0] sm:$0xff] %vm2060, %v529
    %2088 = vst.msk [vmem:[%s4 + $0xd8] sm:$0xff] %vm2060, %v530
    %2089 = vst.msk [vmem:[%s4 + $0xe0] sm:$0xff] %vm2060, %v531
    %2090 = vst.msk [vmem:[%s4 + $0xe8] sm:$0xff] %vm2060, %v532
    %2091 = vst.msk [vmem:[%s4 + $0xf0] sm:$0xff] %vm2060, %v533
    %2092 = vst.msk [vmem:[%s4 + $0xf8] sm:$0xff] %vm2060, %v534
    %vm2093 = vcmask 15368
    %2094 = vst.msk [vmem:[%s4] sm:$0xff] %vm2093, %v535
    %2095 = vst.msk [vmem:[%s4 + $0x8] sm:$0xff] %vm2093, %v536
    %2096 = vst.msk [vmem:[%s4 + $0x10] sm:$0xff] %vm2093, %v537
    %2097 = vst.msk [vmem:[%s4 + $0x18] sm:$0xff] %vm2093, %v538
    %2098 = vst.msk [vmem:[%s4 + $0x20] sm:$0xff] %vm2093, %v539
    %2099 = vst.msk [vmem:[%s4 + $0x28] sm:$0xff] %vm2093, %v540
    %2100 = vst.msk [vmem:[%s4 + $0x30] sm:$0xff] %vm2093, %v541
    %2101 = vst.msk [vmem:[%s4 + $0x38] sm:$0xff] %vm2093, %v542
    %2102 = vst.msk [vmem:[%s4 + $0x40] sm:$0xff] %vm2093, %v543
    %2103 = vst.msk [vmem:[%s4 + $0x48] sm:$0xff] %vm2093, %v544
    %2104 = vst.msk [vmem:[%s4 + $0x50] sm:$0xff] %vm2093, %v545
    %2105 = vst.msk [vmem:[%s4 + $0x58] sm:$0xff] %vm2093, %v546
    %2106 = vst.msk [vmem:[%s4 + $0x60] sm:$0xff] %vm2093, %v547
    %2107 = vst.msk [vmem:[%s4 + $0x68] sm:$0xff] %vm2093, %v548
    %2108 = vst.msk [vmem:[%s4 + $0x70] sm:$0xff] %vm2093, %v549
    %2109 = vst.msk [vmem:[%s4 + $0x78] sm:$0xff] %vm2093, %v550
    %2110 = vst.msk [vmem:[%s4 + $0x80] sm:$0xff] %vm2093, %v551
    %2111 = vst.msk [vmem:[%s4 + $0x88] sm:$0xff] %vm2093, %v552
    %2112 = vst.msk [vmem:[%s4 + $0x90] sm:$0xff] %vm2093, %v553
    %2113 = vst.msk [vmem:[%s4 + $0x98] sm:$0xff] %vm2093, %v554
    %2114 = vst.msk [vmem:[%s4 + $0xa0] sm:$0xff] %vm2093, %v555
    %2115 = vst.msk [vmem:[%s4 + $0xa8] sm:$0xff] %vm2093, %v556
    %2116 = vst.msk [vmem:[%s4 + $0xb0] sm:$0xff] %vm2093, %v557
    %2117 = vst.msk [vmem:[%s4 + $0xb8] sm:$0xff] %vm2093, %v558
    %2118 = vst.msk [vmem:[%s4 + $0xc0] sm:$0xff] %vm2093, %v559
    %2119 = vst.msk [vmem:[%s4 + $0xc8] sm:$0xff] %vm2093, %v560
    %2120 = vst.msk [vmem:[%s4 + $0xd0] sm:$0xff] %vm2093, %v561
    %2121 = vst.msk [vmem:[%s4 + $0xd8] sm:$0xff] %vm2093, %v562
    %2122 = vst.msk [vmem:[%s4 + $0xe0] sm:$0xff] %vm2093, %v563
    %2123 = vst.msk [vmem:[%s4 + $0xe8] sm:$0xff] %vm2093, %v564
    %2124 = vst.msk [vmem:[%s4 + $0xf0] sm:$0xff] %vm2093, %v565
    %2125 = vst.msk [vmem:[%s4 + $0xf8] sm:$0xff] %vm2093, %v566
    // Predicated region
    $region29: #{_cost_iwe_eval.1} parent=1 // pred_check
      _
    $region30: #{_cost_iwe_eval.1} parent=1 // pred_check_branch
      %2127 = sbr.rel (0) target = $region32
    $region31: #{_cost_iwe_eval.1} parent=1 // pred_region
      _
    $region32: #{_cost_iwe_eval.1} parent=1 // pred_fallthru
      _
    // Predicated region
    $region33: #{_cost_iwe_eval.1} parent=1 // pred_check
      _
    $region34: #{_cost_iwe_eval.1} parent=1 // pred_check_branch
      %2129 = sbr.rel (0) target = $region36
    $region35: #{_cost_iwe_eval.1} parent=1 // pred_region
      _
    $region36: #{_cost_iwe_eval.1} parent=1 // pred_fallthru
      _
    %2130 = vsyncpa [#allocation4], 1

</llo_original>
